<compile_context>
chip_gen: v6e
topology: v6e:2x2x1
jax: 0.10.0
libtpu: 0.0.40
codegen_flags: <defaults>
</compile_context>

<pallas_src>
import jax
import jax.numpy as jnp
from jax.experimental import pallas as pl
from jax.experimental.pallas import tpu as pltpu


_VMEM_LIMIT = 48 * 1024 * 1024   # safe on v5e/v6e (128 MiB) and v7x (64 MiB)
_FUSED_MAX_NODES = 1024          # above this, switch to the row-tiled path


# ----------------------------------------------------------------------------
# Fused whole-model kernel (small/medium N): conv1 -> relu -> conv2 -> relu ->
# linear2 -> sigmoid, all in one pallas_call.  Intermediates stay in VMEM.
# ----------------------------------------------------------------------------
def _fused_gcn_kernel(a_ref, x_ref, w1_ref, b1_ref, w2_ref, b2_ref,
                      wl_ref, bl_ref, xout_ref, y_ref):
    a = a_ref[...]                      # (N, N)  bf16
    x = x_ref[...]                      # (N, F)  bf16

    # ---- conv1: relu( [A@X | X] @ [W_rel ; W_root] + b ) ----
    agg1 = jnp.dot(a, x, preferred_element_type=jnp.float32)
    lhs1 = jnp.concatenate([agg1.astype(jnp.bfloat16), x], axis=-1)
    h = jnp.dot(lhs1, w1_ref[...], preferred_element_type=jnp.float32)
    h = jnp.maximum(h + b1_ref[...], 0.0)

    # dropout(p=0.3): identity in eval mode
    h_bf = h.astype(jnp.bfloat16)

    # ---- conv2 ----
    agg2 = jnp.dot(a, h_bf, preferred_element_type=jnp.float32)
    lhs2 = jnp.concatenate([agg2.astype(jnp.bfloat16), h_bf], axis=-1)
    y = jnp.dot(lhs2, w2_ref[...], preferred_element_type=jnp.float32)
    y = jnp.maximum(y + b2_ref[...], 0.0)
    y_ref[...] = y

    # ---- linear2 + sigmoid ----
    logits = jnp.dot(y.astype(jnp.bfloat16), wl_ref[...],
                     preferred_element_type=jnp.float32) + bl_ref[...]
    xout_ref[...] = jax.nn.sigmoid(logits)


def gcn_fused(a_bf, x_bf, w1, b1, w2, b2, wl, bl):
    n, f_in = x_bf.shape
    f_hid = w1.shape[1]
    c_out = wl.shape[1]
    flops = (2 * n * n * f_in + 2 * n * (2 * f_in) * f_hid      # conv1
             + 2 * n * n * f_hid + 2 * n * (2 * f_hid) * f_hid  # conv2
             + 2 * n * f_hid * c_out)                           # linear2
    bytes_accessed = (2 * (a_bf.size + x_bf.size + w1.size + w2.size + wl.size)
                      + 4 * (b1.size + b2.size + bl.size)
                      + 4 * (n * c_out + n * f_hid))
    return pl.pallas_call(
        _fused_gcn_kernel,
        out_shape=(jax.ShapeDtypeStruct((n, c_out), jnp.float32),
                   jax.ShapeDtypeStruct((n, f_hid), jnp.float32)),
        compiler_params=pltpu.CompilerParams(vmem_limit_bytes=_VMEM_LIMIT),
        cost_estimate=pl.CostEstimate(flops=int(flops),
                                      transcendentals=int(n * c_out),
                                      bytes_accessed=int(bytes_accessed)),
    )(a_bf, x_bf, w1, b1, w2, b2, wl, bl)


# ----------------------------------------------------------------------------
# Row-tiled per-layer kernels (large N): grid over node rows, weights and the
# full X resident in VMEM, "parallel" row axis (uses both v7x TensorCores).
# ----------------------------------------------------------------------------
def _graphconv_relu_tiled_kernel(a_ref, xfull_ref, xrow_ref, w_ref, b_ref, o_ref):
    # a_ref: (TM, N) bf16 ; xfull_ref: (N, F) bf16 ; xrow_ref: (TM, F) bf16
    # w_ref: (2F, F_out) bf16 (= [W_rel ; W_root]) ; b_ref: (1, F_out) f32
    agg = jnp.dot(a_ref[...], xfull_ref[...], preferred_element_type=jnp.float32)
    lhs = jnp.concatenate([agg.astype(jnp.bfloat16), xrow_ref[...]], axis=-1)
    h = jnp.dot(lhs, w_ref[...], preferred_element_type=jnp.float32) + b_ref[...]
    o_ref[...] = jnp.maximum(h, 0.0).astype(o_ref.dtype)


def graphconv_relu_tiled(a, x, w_stack, b, *, tm, out_dtype=jnp.float32):
    n_pad, f_in = x.shape
    f_out = w_stack.shape[1]
    nt = n_pad // tm
    return pl.pallas_call(
        _graphconv_relu_tiled_kernel,
        out_shape=jax.ShapeDtypeStruct((n_pad, f_out), out_dtype),
        grid_spec=pltpu.PrefetchScalarGridSpec(
            num_scalar_prefetch=0,
            grid=(nt,),
            in_specs=[
                pl.BlockSpec((tm, n_pad), lambda i: (i, 0)),        # A row tile
                pl.BlockSpec((n_pad, f_in), lambda i: (0, 0)),      # X (resident)
                pl.BlockSpec((tm, f_in), lambda i: (i, 0)),         # X row tile
                pl.BlockSpec((2 * f_in, f_out), lambda i: (0, 0)),  # W (resident)
                pl.BlockSpec((1, f_out), lambda i: (0, 0)),         # bias
            ],
            out_specs=pl.BlockSpec((tm, f_out), lambda i: (i, 0)),
        ),
        compiler_params=pltpu.CompilerParams(
            dimension_semantics=("parallel",),
            vmem_limit_bytes=_VMEM_LIMIT),
    )(a, x, x, w_stack, b)


def _linear_sigmoid_tiled_kernel(y_ref, w_ref, b_ref, o_ref):
    logits = jnp.dot(y_ref[...].astype(jnp.bfloat16), w_ref[...],
                     preferred_element_type=jnp.float32) + b_ref[...]
    o_ref[...] = jax.nn.sigmoid(logits)


def linear_sigmoid_tiled(y, w, b, *, tm):
    n_pad, f_in = y.shape
    f_out = w.shape[1]
    nt = n_pad // tm
    return pl.pallas_call(
        _linear_sigmoid_tiled_kernel,
        out_shape=jax.ShapeDtypeStruct((n_pad, f_out), jnp.float32),
        grid_spec=pltpu.PrefetchScalarGridSpec(
            num_scalar_prefetch=0,
            grid=(nt,),
            in_specs=[
                pl.BlockSpec((tm, f_in), lambda i: (i, 0)),
                pl.BlockSpec((f_in, f_out), lambda i: (0, 0)),
                pl.BlockSpec((1, f_out), lambda i: (0, 0)),
            ],
            out_specs=pl.BlockSpec((tm, f_out), lambda i: (i, 0)),
        ),
        compiler_params=pltpu.CompilerParams(
            dimension_semantics=("parallel",),
            vmem_limit_bytes=_VMEM_LIMIT),
    )(y, w, b)


# ----------------------------------------------------------------------------
# Glue: dense, mean-normalized adjacency from (edge_index, edge_weight)
# ----------------------------------------------------------------------------
def build_mean_adjacency(edge_index, edge_weight, num_nodes):
    src, tgt = edge_index[0], edge_index[1]
    a = jnp.zeros((num_nodes, num_nodes), jnp.float32)
    a = a.at[tgt, src].add(edge_weight)                       # message j -> i
    deg = jnp.zeros((num_nodes,), jnp.float32).at[tgt].add(1.0)
    return a / jnp.maximum(deg, 1.0)[:, None]                 # mean over messages


# ----------------------------------------------------------------------------
# Full model forward
# ----------------------------------------------------------------------------
def gcn_forward(params, x, edge_index, edge_weight, *, row_tile=256,
                force_tiled=False):
    n, f_in = x.shape
    a = build_mean_adjacency(edge_index, edge_weight, n)

    # Stack W_rel / W_root along the contraction dim so each GraphConv is two
    # MXU matmuls:  relu( [A@X | X] @ [W_rel ; W_root] + b ).  Cast MXU inputs
    # to bf16 (f32 accumulation is preserved via preferred_element_type).
    w1 = jnp.concatenate([params["c1_wrel"], params["c1_wroot"]], axis=0).astype(jnp.bfloat16)
    w2 = jnp.concatenate([params["c2_wrel"], params["c2_wroot"]], axis=0).astype(jnp.bfloat16)
    wl = params["lin2_w"].astype(jnp.bfloat16)
    b1, b2, bl = params["c1_brel"], params["c2_brel"], params["lin2_b"]
    a_bf = a.astype(jnp.bfloat16)
    x_bf = x.astype(jnp.bfloat16)

    if (not force_tiled) and n <= _FUSED_MAX_NODES:
        return gcn_fused(a_bf, x_bf, w1, b1, w2, b2, wl, bl)

    # ---- row-tiled path: bounds VMEM to TM*N + resident X/weights, pipelines
    #      DMA/compute, and the "parallel" row axis shards over v7x's 2 TCs ----
    tm = int(row_tile)
    n_pad = -(-n // tm) * tm
    pad = n_pad - n
    a_p = jnp.pad(a_bf, ((0, pad), (0, pad)))
    x_p = jnp.pad(x_bf, ((0, pad), (0, 0)))

    h = graphconv_relu_tiled(a_p, x_p, w1, b1, tm=tm, out_dtype=jnp.bfloat16)
    # dropout(p=0.3): identity in eval mode
    y = graphconv_relu_tiled(a_p, h, w2, b2, tm=tm, out_dtype=jnp.float32)
    x_out = linear_sigmoid_tiled(y, wl, bl, tm=tm)
    return x_out[:n], y[:n]


# ----------------------------------------------------------------------------
# Deterministic parameter init (synthetic weights, shapes from __init__)
# ----------------------------------------------------------------------------
def init_params(key, f_in=384, f_hid=384, out_channels=128):
    ks = jax.random.split(key, 8)

    def w(k, i, o):
        return (jax.random.normal(k, (i, o), jnp.float32) / jnp.sqrt(i)).astype(jnp.float32)

    return {
        "c1_wrel":  w(ks[0], f_in, f_hid),
        "c1_wroot": w(ks[1], f_in, f_hid),
        "c1_brel":  jax.random.normal(ks[2], (1, f_hid), jnp.float32) * 0.01,
        "c2_wrel":  w(ks[3], f_hid, f_hid),
        "c2_wroot": w(ks[4], f_hid, f_hid),
        "c2_brel":  jax.random.normal(ks[5], (1, f_hid), jnp.float32) * 0.01,
        "lin2_w":   w(ks[6], f_hid, out_channels),
        "lin2_b":   jax.random.normal(ks[7], (1, out_channels), jnp.float32) * 0.01,
    }


if __name__ == "__main__":
    key = jax.random.PRNGKey(0)
    k_x, k_e, k_w, k_p, k_x2, k_e2, k_w2 = jax.random.split(key, 7)

    feat, out_channels = 384, 128
    params = init_params(k_p, f_in=feat, f_hid=feat, out_channels=out_channels)

    fwd = jax.jit(gcn_forward, static_argnames=("row_tile", "force_tiled"))

    # --- small graph: fully fused single-kernel path ---
    n1, e1 = 8, 16
    x1 = jax.random.normal(k_x, (n1, feat), jnp.float32)
    ei1 = jax.random.randint(k_e, (2, e1), 0, n1, jnp.int32)
    ew1 = jax.random.uniform(k_w, (e1,), jnp.float32)
    x_out1, y_out1 = fwd(params, x1, ei1, ew1)
    jax.block_until_ready((x_out1, y_out1))
    assert x_out1.shape == (n1, out_channels) and y_out1.shape == (n1, feat)
    assert bool(jnp.all(jnp.isfinite(x_out1))) and bool(jnp.all(jnp.isfinite(y_out1)))

    # --- medium graph: exercise the row-tiled / megacore-parallel path and
    #     cross-check it against the fused path (same math, same bf16 casts) ---
    n2, e2 = 256, 2048
    x2 = jax.random.normal(k_x2, (n2, feat), jnp.float32)
    ei2 = jax.random.randint(k_e2, (2, e2), 0, n2, jnp.int32)
    ew2 = jax.random.uniform(k_w2, (e2,), jnp.float32)
    xo_f, y_f = fwd(params, x2, ei2, ew2)                                  # fused
    xo_t, y_t = fwd(params, x2, ei2, ew2, row_tile=128, force_tiled=True)  # tiled
    jax.block_until_ready((xo_f, y_f, xo_t, y_t))
    assert xo_t.shape == (n2, out_channels) and y_t.shape == (n2, feat)
    assert jnp.allclose(xo_f, xo_t, atol=1e-1, rtol=1e-1)
    assert jnp.allclose(y_f, y_t, atol=2e-1, rtol=1e-1)

    print("KERNEL_OK")
</pallas_src>

<mosaic_0001>
module attributes {stable_mosaic.version = 11 : i64} {
  func.func private @main(%arg0: i32) attributes {dimension_semantics = [#tpu.dimension_semantics<core_parallel>], iteration_bounds = array<i64: 2>, tpu.core_type = #tpu.core_type<sc_scalar_subcore>, window_params = []} {
    return
  }
}

module attributes {stable_mosaic.version = 11 : i64} {
  func.func private @main(%arg0: i32) attributes {dimension_semantics = [#tpu.dimension_semantics<core_parallel>], iteration_bounds = array<i64: 2>, tpu.core_type = #tpu.core_type<sc_scalar_subcore>, window_params = []} {
    return
  }
}

module attributes {stable_mosaic.version = 11 : i64} {
  func.func @_fused_gcn_kernel(%arg0: memref<8x8xbf16, #tpu.memory_space<vmem>>, %arg1: memref<8x384xbf16, #tpu.memory_space<vmem>>, %arg2: memref<768x384xbf16, #tpu.memory_space<vmem>>, %arg3: memref<1x384xf32, #tpu.memory_space<vmem>>, %arg4: memref<768x384xbf16, #tpu.memory_space<vmem>>, %arg5: memref<1x384xf32, #tpu.memory_space<vmem>>, %arg6: memref<384x128xbf16, #tpu.memory_space<vmem>>, %arg7: memref<1x128xf32, #tpu.memory_space<vmem>>, %arg8: memref<8x128xf32, #tpu.memory_space<vmem>>, %arg9: memref<8x384xf32, #tpu.memory_space<vmem>>) attributes {dimension_semantics = [], scalar_prefetch = 0 : i64, scratch_operands = 0 : i64, tpu.core_type = #tpu.core_type<tc>} {
    %c0 = arith.constant 0 : index
    %c0_0 = arith.constant 0 : index
    %0 = vector.load %arg0[%c0, %c0_0] : memref<8x8xbf16, #tpu.memory_space<vmem>>, vector<8x8xbf16>
    %c0_1 = arith.constant 0 : index
    %c0_2 = arith.constant 0 : index
    %1 = vector.load %arg1[%c0_1, %c0_2] : memref<8x384xbf16, #tpu.memory_space<vmem>>, vector<8x384xbf16>
    %cst = arith.constant dense<0.000000e+00> : vector<8x384xf32>
    %2 = tpu.matmul %0, %1, %cst {dimension_numbers = #tpu.dot_dimension_numbers<[1], [0], [0], [1], [0, 0, 1, 1], [], []>} : vector<8x8xbf16>, vector<8x384xbf16>, vector<8x384xf32> -> vector<8x384xf32>
    %3 = arith.truncf %2 : vector<8x384xf32> to vector<8x384xbf16>
    %4 = tpu.concatenate %3, %1 in 1 : vector<8x384xbf16>, vector<8x384xbf16> -> vector<8x768xbf16>
    %c0_3 = arith.constant 0 : index
    %c0_4 = arith.constant 0 : index
    %5 = vector.load %arg2[%c0_3, %c0_4] : memref<768x384xbf16, #tpu.memory_space<vmem>>, vector<768x384xbf16>
    %cst_5 = arith.constant dense<0.000000e+00> : vector<8x384xf32>
    %6 = tpu.matmul %4, %5, %cst_5 {dimension_numbers = #tpu.dot_dimension_numbers<[1], [0], [0], [1], [0, 0, 1, 1], [], []>} : vector<8x768xbf16>, vector<768x384xbf16>, vector<8x384xf32> -> vector<8x384xf32>
    %c0_6 = arith.constant 0 : index
    %c0_7 = arith.constant 0 : index
    %7 = vector.load %arg3[%c0_6, %c0_7] : memref<1x384xf32, #tpu.memory_space<vmem>>, vector<1x384xf32>
    %8 = vector.broadcast %7 : vector<1x384xf32> to vector<8x384xf32>
    %9 = arith.addf %6, %8 : vector<8x384xf32>
    %cst_8 = arith.constant 0.000000e+00 : f32
    %10 = vector.broadcast %cst_8 : f32 to vector<8x384xf32>
    %11 = arith.maximumf %9, %10 : vector<8x384xf32>
    %12 = arith.truncf %11 : vector<8x384xf32> to vector<8x384xbf16>
    %cst_9 = arith.constant dense<0.000000e+00> : vector<8x384xf32>
    %13 = tpu.matmul %0, %12, %cst_9 {dimension_numbers = #tpu.dot_dimension_numbers<[1], [0], [0], [1], [0, 0, 1, 1], [], []>} : vector<8x8xbf16>, vector<8x384xbf16>, vector<8x384xf32> -> vector<8x384xf32>
    %14 = arith.truncf %13 : vector<8x384xf32> to vector<8x384xbf16>
    %15 = tpu.concatenate %14, %12 in 1 : vector<8x384xbf16>, vector<8x384xbf16> -> vector<8x768xbf16>
    %c0_10 = arith.constant 0 : index
    %c0_11 = arith.constant 0 : index
    %16 = vector.load %arg4[%c0_10, %c0_11] : memref<768x384xbf16, #tpu.memory_space<vmem>>, vector<768x384xbf16>
    %cst_12 = arith.constant dense<0.000000e+00> : vector<8x384xf32>
    %17 = tpu.matmul %15, %16, %cst_12 {dimension_numbers = #tpu.dot_dimension_numbers<[1], [0], [0], [1], [0, 0, 1, 1], [], []>} : vector<8x768xbf16>, vector<768x384xbf16>, vector<8x384xf32> -> vector<8x384xf32>
    %c0_13 = arith.constant 0 : index
    %c0_14 = arith.constant 0 : index
    %18 = vector.load %arg5[%c0_13, %c0_14] : memref<1x384xf32, #tpu.memory_space<vmem>>, vector<1x384xf32>
    %19 = vector.broadcast %18 : vector<1x384xf32> to vector<8x384xf32>
    %20 = arith.addf %17, %19 : vector<8x384xf32>
    %cst_15 = arith.constant 0.000000e+00 : f32
    %21 = vector.broadcast %cst_15 : f32 to vector<8x384xf32>
    %22 = arith.maximumf %20, %21 : vector<8x384xf32>
    %c0_16 = arith.constant 0 : index
    %c0_17 = arith.constant 0 : index
    %23 = vector.load %arg9[%c0_16, %c0_17] : memref<8x384xf32, #tpu.memory_space<vmem>>, vector<8x384xf32>
    tpu.vector_store %arg9[%c0_16, %c0_17], %22 {strides = array<i32>} : memref<8x384xf32, #tpu.memory_space<vmem>>, vector<8x384xf32>,
    %24 = arith.truncf %22 : vector<8x384xf32> to vector<8x384xbf16>
    %c0_18 = arith.constant 0 : index
    %c0_19 = arith.constant 0 : index
    %25 = vector.load %arg6[%c0_18, %c0_19] : memref<384x128xbf16, #tpu.memory_space<vmem>>, vector<384x128xbf16>
    %cst_20 = arith.constant dense<0.000000e+00> : vector<8x128xf32>
    %26 = tpu.matmul %24, %25, %cst_20 {dimension_numbers = #tpu.dot_dimension_numbers<[1], [0], [0], [1], [0, 0, 1, 1], [], []>} : vector<8x384xbf16>, vector<384x128xbf16>, vector<8x128xf32> -> vector<8x128xf32>
    %c0_21 = arith.constant 0 : index
    %c0_22 = arith.constant 0 : index
    %27 = vector.load %arg7[%c0_21, %c0_22] : memref<1x128xf32, #tpu.memory_space<vmem>>, vector<1x128xf32>
    %28 = vector.broadcast %27 : vector<1x128xf32> to vector<8x128xf32>
    %29 = arith.addf %26, %28 : vector<8x128xf32>
    %30 = arith.negf %29 : vector<8x128xf32>
    %31 = math.exp %30 : vector<8x128xf32>
    %cst_23 = arith.constant 1.000000e+00 : f32
    %32 = vector.broadcast %cst_23 : f32 to vector<8x128xf32>
    %33 = arith.addf %32, %31 : vector<8x128xf32>
    %34 = arith.divf %32, %33 : vector<8x128xf32>
    %c0_24 = arith.constant 0 : index
    %c0_25 = arith.constant 0 : index
    %35 = vector.load %arg8[%c0_24, %c0_25] : memref<8x128xf32, #tpu.memory_space<vmem>>, vector<8x128xf32>
    tpu.vector_store %arg8[%c0_24, %c0_25], %34 {strides = array<i32>} : memref<8x128xf32, #tpu.memory_space<vmem>>, vector<8x128xf32>,
    return
  }
}

</mosaic_0001>

<llo_original>
// kernel: gcn_forward.1
$region0: #{gcn_forward.1}
  #allocation0 [shape = 'u32[]', space=smem, size = 0x4, offset = 0x4, fixed_abs, tag = 'smem constant byte address 0x4 - core index']
  #allocation1 [shape = 'u32[144,128]{1,0:T(1,128)}', space=vmem, size = 0x12000, scoped, tag = 'internal scratch']
  %s0 = inlined_call_operand.vmem [shape: bf16[8,8], index: 0, kind: input, shape index: {}]
  %s1 = inlined_call_operand.vmem [shape: bf16[8,384], index: 1, kind: input, shape index: {}]
  %s2 = inlined_call_operand.vmem [shape: bf16[768,384], index: 2, kind: input, shape index: {}]
  %s3 = inlined_call_operand.vmem [shape: f32[1,384], index: 3, kind: input, shape index: {}]
  %s4 = inlined_call_operand.vmem [shape: bf16[768,384], index: 4, kind: input, shape index: {}]
  %s5 = inlined_call_operand.vmem [shape: f32[1,384], index: 5, kind: input, shape index: {}]
  %s6 = inlined_call_operand.vmem [shape: bf16[384,128], index: 6, kind: input, shape index: {}]
  %s7 = inlined_call_operand.vmem [shape: f32[1,128], index: 7, kind: input, shape index: {}]
  %s8 = inlined_call_operand.hbm [shape: f32[8,128], index: 8, kind: output, shape index: {0}]
  %s9 = inlined_call_operand.hbm [shape: f32[8,384], index: 9, kind: output, shape index: {1}]
  %10 = xla_tuple %s8, %s9
  %s11 = sld [smem:[#allocation0]]
  $region50: #{gcn_forward.1} parent=0
    _
  %s13 = ssub.s32 1, %s11
  %s14 = scalar_select 0, %s13, %s11
  $region1: #{gcn_forward.1} parent=0
    #allocation2 [shape = 'u8[4096]{0}', space=vmem, size = 0x1000, scoped, tag = 'output window, operand 0, single buffered']
    #allocation3 [shape = 's32[1]{0}', space=sflag, size = 0x4, scoped, tag = 'scoped memory for gcn_forward.1']
    #allocation4 [shape = 'u8[12288]{0}', space=vmem, size = 0x3000, scoped, tag = 'output window, operand 1, single buffered']
    #allocation5 [shape = 's32[1]{0}', space=sflag, size = 0x4, scoped, tag = 'scoped memory for gcn_forward.1']
    %15 = vsyncpa [#allocation3], 0
    %16 = vsyncpa [#allocation5], 0
    // Predicated region
    $region2: #{gcn_forward.1} parent=1 // pred_check
      _
    $region3: #{gcn_forward.1} parent=1 // pred_check_branch
      %18 = sbr.rel (0) target = $region5
    $region4: #{gcn_forward.1} parent=1 // pred_region
      _
    $region5: #{gcn_forward.1} parent=1 // pred_fallthru
      _
    // Predicated region
    $region6: #{gcn_forward.1} parent=1 // pred_check
      _
    $region7: #{gcn_forward.1} parent=1 // pred_check_branch
      %20 = sbr.rel (0) target = $region9
    $region8: #{gcn_forward.1} parent=1 // pred_region
      _
    $region9: #{gcn_forward.1} parent=1 // pred_fallthru
      _
    // Predicated region
    $region10: #{gcn_forward.1} parent=1 // pred_check
      _
    $region11: #{gcn_forward.1} parent=1 // pred_check_branch
      %22 = sbr.rel (0) target = $region13
    $region12: #{gcn_forward.1} parent=1 // pred_region
      _
    $region13: #{gcn_forward.1} parent=1 // pred_fallthru
      _
    // Predicated region
    $region14: #{gcn_forward.1} parent=1 // pred_check
      _
    $region15: #{gcn_forward.1} parent=1 // pred_check_branch
      %24 = sbr.rel (0) target = $region17
    $region16: #{gcn_forward.1} parent=1 // pred_region
      _
    $region17: #{gcn_forward.1} parent=1 // pred_fallthru
      _
    // Predicated region
    $region18: #{gcn_forward.1} parent=1 // pred_check
      _
    $region19: #{gcn_forward.1} parent=1 // pred_check_branch
      %26 = sbr.rel (0) target = $region21
    $region20: #{gcn_forward.1} parent=1 // pred_region
      _
    $region21: #{gcn_forward.1} parent=1 // pred_fallthru
      _
    // Predicated region
    $region22: #{gcn_forward.1} parent=1 // pred_check
      _
    $region23: #{gcn_forward.1} parent=1 // pred_check_branch
      %28 = sbr.rel (0) target = $region25
    $region24: #{gcn_forward.1} parent=1 // pred_region
      _
    $region25: #{gcn_forward.1} parent=1 // pred_fallthru
      _
    // Predicated region
    $region26: #{gcn_forward.1} parent=1 // pred_check
      _
    $region27: #{gcn_forward.1} parent=1 // pred_check_branch
      %30 = sbr.rel (0) target = $region29
    $region28: #{gcn_forward.1} parent=1 // pred_region
      _
    $region29: #{gcn_forward.1} parent=1 // pred_fallthru
      _
    // Predicated region
    $region30: #{gcn_forward.1} parent=1 // pred_check
      _
    $region31: #{gcn_forward.1} parent=1 // pred_check_branch
      %32 = sbr.rel (0) target = $region33
    $region32: #{gcn_forward.1} parent=1 // pred_region
      _
    $region33: #{gcn_forward.1} parent=1 // pred_fallthru
      _
    %v34 = vld [vmem:[%s0] sm:$0xf]
    %v35 = vld [vmem:[%s1] sm:$0xff]
    %v36 = vld [vmem:[%s1 + $0x8] sm:$0xf]
    %v39 = vunpack.c.l.b16 %v35
    %v40 = vunpack.c.h.b16 %v35
    %v41 = vunpack.c.l.b16 %v36
    %v42 = vpack.c.b16 %v39, %v39
    %v43 = vpack.c.b16 %v40, %v40
    %v44 = vpack.c.b16 %v41, %v41
    %vm45 = vcmask 64512
    %v47 = vsel %vm45, %v34, 0
    %vm49 = vcmask 1043456
    %v51 = vsel %vm49, %v42, 0
    %v54 = vsel %vm49, %v43, 0
    %v57 = vsel %vm49, %v44, 0
    %59 = vmatprep.subr.bf16.mxu0 0
    %60 = vmatpush1.bf16.msra.mxu0 0
    %61 = vmatprep.subr.bf16.mxu0 0
    %62 = vmatpush1.bf16.msra.mxu0 0
    %63 = vmatprep.subr.bf16.mxu0 0
    %64 = vmatpush1.bf16.msra.mxu0 0
    %65 = vmatprep.subr.bf16.mxu0 0
    %66 = vmatpush1.bf16.msra.mxu0 0
    %67 = vmatprep.subr.bf16.mxu0 0
    %68 = vmatpush1.bf16.msra.mxu0 0
    %69 = vmatprep.subr.bf16.mxu0 0
    %70 = vmatpush1.bf16.msra.mxu0 0
    %71 = vmatprep.subr.bf16.mxu0 0
    %72 = vmatpush1.bf16.msra.mxu0 0
    %73 = vmatprep.subr.bf16.mxu0 %v54
    %74 = vmatpush1.bf16.msra.mxu0 %v51
    %75 = vmatprep.subr.bf16.mxu0 0
    %76 = vmatpush2.bf16.msra.mxu0 0
    %77 = vmatprep.subr.bf16.mxu0 0
    %78 = vmatpush2.bf16.msra.mxu0 0
    %79 = vmatprep.subr.bf16.mxu0 0
    %80 = vmatpush2.bf16.msra.mxu0 0
    %81 = vmatprep.subr.bf16.mxu0 0
    %82 = vmatpush2.bf16.msra.mxu0 0
    %83 = vmatprep.subr.bf16.mxu0 0
    %84 = vmatpush2.bf16.msra.mxu0 0
    %85 = vmatprep.subr.bf16.mxu0 0
    %86 = vmatpush2.bf16.msra.mxu0 0
    %87 = vmatprep.subr.bf16.mxu0 0
    %88 = vmatpush2.bf16.msra.mxu0 0
    %89 = vmatprep.subr.bf16.mxu0 0
    %90 = vmatpush2.bf16.msra.mxu0 0
    %91 = vmatprep.mubr.bf16.mxu0 0
    %92 = vmatmul.mubr.bf16.gmra.mxu0 %v47
    %v93 = vpop.f32.mrf.mxu0
    %v94 = vadd.f32 0.0, %v93
    %v95 = vpop.f32.mrf.mxu0
    %v96 = vadd.f32 0.0, %v95
    %v97 = vpop.f32.mrf.mxu0
    %v98 = vpop.f32.mrf.mxu0
    %99 = vdwg.mxu0
    %100 = vmatprep.subr.bf16.mxu0 0
    %101 = vmatpush1.bf16.msra.mxu0 0
    %102 = vmatprep.subr.bf16.mxu0 0
    %103 = vmatpush1.bf16.msra.mxu0 0
    %104 = vmatprep.subr.bf16.mxu0 0
    %105 = vmatpush1.bf16.msra.mxu0 0
    %106 = vmatprep.subr.bf16.mxu0 0
    %107 = vmatpush1.bf16.msra.mxu0 0
    %108 = vmatprep.subr.bf16.mxu0 0
    %109 = vmatpush1.bf16.msra.mxu0 0
    %110 = vmatprep.subr.bf16.mxu0 0
    %111 = vmatpush1.bf16.msra.mxu0 0
    %112 = vmatprep.subr.bf16.mxu0 0
    %113 = vmatpush1.bf16.msra.mxu0 0
    %114 = vmatprep.subr.bf16.mxu0 0
    %115 = vmatpush1.bf16.msra.mxu0 %v57
    %116 = vmatprep.subr.bf16.mxu0 0
    %117 = vmatpush2.bf16.msra.mxu0 0
    %118 = vmatprep.subr.bf16.mxu0 0
    %119 = vmatpush2.bf16.msra.mxu0 0
    %120 = vmatprep.subr.bf16.mxu0 0
    %121 = vmatpush2.bf16.msra.mxu0 0
    %122 = vmatprep.subr.bf16.mxu0 0
    %123 = vmatpush2.bf16.msra.mxu0 0
    %124 = vmatprep.subr.bf16.mxu0 0
    %125 = vmatpush2.bf16.msra.mxu0 0
    %126 = vmatprep.subr.bf16.mxu0 0
    %127 = vmatpush2.bf16.msra.mxu0 0
    %128 = vmatprep.subr.bf16.mxu0 0
    %129 = vmatpush2.bf16.msra.mxu0 0
    %130 = vmatprep.subr.bf16.mxu0 0
    %131 = vmatpush2.bf16.msra.mxu0 0
    %132 = vmatprep.mubr.bf16.mxu0 0
    %133 = vmatmul.mubr.bf16.gmra.mxu0 %v47
    %v134 = vpop.f32.mrf.mxu0
    %v135 = vadd.f32 0.0, %v134
    %v136 = vpop.f32.mrf.mxu0
    %v137 = vpop.f32.mrf.mxu0
    %v138 = vpop.f32.mrf.mxu0
    %139 = vdwg.mxu0
    %v140 = vpack.c.bf16 %v94, %v94
    %v141 = vpack.c.bf16 %v96, %v96
    %v142 = vpack.c.bf16 %v135, %v135
    %v146 = vld [vmem:[%s2] sm:$0xff]
    %v147 = vld [vmem:[%s2 + $0x8] sm:$0xf]
    %v148 = vld [vmem:[%s2 + $0xc] sm:$0xff]
    %v149 = vld [vmem:[%s2 + $0x14] sm:$0xf]
    %v150 = vld [vmem:[%s2 + $0x18] sm:$0xff]
    %v151 = vld [vmem:[%s2 + $0x20] sm:$0xf]
    %v152 = vld [vmem:[%s2 + $0x24] sm:$0xff]
    %v153 = vld [vmem:[%s2 + $0x2c] sm:$0xf]
    %v154 = vld [vmem:[%s2 + $0x30] sm:$0xff]
    %v155 = vld [vmem:[%s2 + $0x38] sm:$0xf]
    %v156 = vld [vmem:[%s2 + $0x3c] sm:$0xff]
    %v157 = vld [vmem:[%s2 + $0x44] sm:$0xf]
    %v158 = vld [vmem:[%s2 + $0x48] sm:$0xff]
    %v159 = vld [vmem:[%s2 + $0x50] sm:$0xf]
    %v160 = vld [vmem:[%s2 + $0x54] sm:$0xff]
    %v161 = vld [vmem:[%s2 + $0x5c] sm:$0xf]
    %v162 = vld [vmem:[%s2 + $0x60] sm:$0xff]
    %v163 = vld [vmem:[%s2 + $0x68] sm:$0xf]
    %v164 = vld [vmem:[%s2 + $0x6c] sm:$0xff]
    %v165 = vld [vmem:[%s2 + $0x74] sm:$0xf]
    %v166 = vld [vmem:[%s2 + $0x78] sm:$0xff]
    %v167 = vld [vmem:[%s2 + $0x80] sm:$0xf]
    %v168 = vld [vmem:[%s2 + $0x84] sm:$0xff]
    %v169 = vld [vmem:[%s2 + $0x8c] sm:$0xf]
    %v170 = vld [vmem:[%s2 + $0x90] sm:$0xff]
    %v171 = vld [vmem:[%s2 + $0x98] sm:$0xf]
    %v172 = vld [vmem:[%s2 + $0x9c] sm:$0xff]
    %v173 = vld [vmem:[%s2 + $0xa4] sm:$0xf]
    %v174 = vld [vmem:[%s2 + $0xa8] sm:$0xff]
    %v175 = vld [vmem:[%s2 + $0xb0] sm:$0xf]
    %v176 = vld [vmem:[%s2 + $0xb4] sm:$0xff]
    %v177 = vld [vmem:[%s2 + $0xbc] sm:$0xf]
    %v178 = vld [vmem:[%s2 + $0xc0] sm:$0xff]
    %v179 = vld [vmem:[%s2 + $0xc8] sm:$0xf]
    %v180 = vld [vmem:[%s2 + $0xcc] sm:$0xff]
    %v181 = vld [vmem:[%s2 + $0xd4] sm:$0xf]
    %v182 = vld [vmem:[%s2 + $0xd8] sm:$0xff]
    %v183 = vld [vmem:[%s2 + $0xe0] sm:$0xf]
    %v184 = vld [vmem:[%s2 + $0xe4] sm:$0xff]
    %v185 = vld [vmem:[%s2 + $0xec] sm:$0xf]
    %v186 = vld [vmem:[%s2 + $0xf0] sm:$0xff]
    %v187 = vld [vmem:[%s2 + $0xf8] sm:$0xf]
    %v188 = vld [vmem:[%s2 + $0xfc] sm:$0xff]
    %v189 = vld [vmem:[%s2 + $0x104] sm:$0xf]
    %v190 = vld [vmem:[%s2 + $0x108] sm:$0xff]
    %v191 = vld [vmem:[%s2 + $0x110] sm:$0xf]
    %v192 = vld [vmem:[%s2 + $0x114] sm:$0xff]
    %v193 = vld [vmem:[%s2 + $0x11c] sm:$0xf]
    %v194 = vld [vmem:[%s2 + $0x120] sm:$0xff]
    %v195 = vld [vmem:[%s2 + $0x128] sm:$0xf]
    %v196 = vld [vmem:[%s2 + $0x12c] sm:$0xff]
    %v197 = vld [vmem:[%s2 + $0x134] sm:$0xf]
    %v198 = vld [vmem:[%s2 + $0x138] sm:$0xff]
    %v199 = vld [vmem:[%s2 + $0x140] sm:$0xf]
    %v200 = vld [vmem:[%s2 + $0x144] sm:$0xff]
    %v201 = vld [vmem:[%s2 + $0x14c] sm:$0xf]
    %v202 = vld [vmem:[%s2 + $0x150] sm:$0xff]
    %v203 = vld [vmem:[%s2 + $0x158] sm:$0xf]
    %v204 = vld [vmem:[%s2 + $0x15c] sm:$0xff]
    %v205 = vld [vmem:[%s2 + $0x164] sm:$0xf]
    %v206 = vld [vmem:[%s2 + $0x168] sm:$0xff]
    %v207 = vld [vmem:[%s2 + $0x170] sm:$0xf]
    %v208 = vld [vmem:[%s2 + $0x174] sm:$0xff]
    %v209 = vld [vmem:[%s2 + $0x17c] sm:$0xf]
    %v210 = vld [vmem:[%s2 + $0x180] sm:$0xff]
    %v211 = vld [vmem:[%s2 + $0x188] sm:$0xf]
    %v212 = vld [vmem:[%s2 + $0x18c] sm:$0xff]
    %v213 = vld [vmem:[%s2 + $0x194] sm:$0xf]
    %v214 = vld [vmem:[%s2 + $0x198] sm:$0xff]
    %v215 = vld [vmem:[%s2 + $0x1a0] sm:$0xf]
    %v216 = vld [vmem:[%s2 + $0x1a4] sm:$0xff]
    %v217 = vld [vmem:[%s2 + $0x1ac] sm:$0xf]
    %v218 = vld [vmem:[%s2 + $0x1b0] sm:$0xff]
    %v219 = vld [vmem:[%s2 + $0x1b8] sm:$0xf]
    %v220 = vld [vmem:[%s2 + $0x1bc] sm:$0xff]
    %v221 = vld [vmem:[%s2 + $0x1c4] sm:$0xf]
    %v222 = vld [vmem:[%s2 + $0x1c8] sm:$0xff]
    %v223 = vld [vmem:[%s2 + $0x1d0] sm:$0xf]
    %v224 = vld [vmem:[%s2 + $0x1d4] sm:$0xff]
    %v225 = vld [vmem:[%s2 + $0x1dc] sm:$0xf]
    %v226 = vld [vmem:[%s2 + $0x1e0] sm:$0xff]
    %v227 = vld [vmem:[%s2 + $0x1e8] sm:$0xf]
    %v228 = vld [vmem:[%s2 + $0x1ec] sm:$0xff]
    %v229 = vld [vmem:[%s2 + $0x1f4] sm:$0xf]
    %v230 = vld [vmem:[%s2 + $0x1f8] sm:$0xff]
    %v231 = vld [vmem:[%s2 + $0x200] sm:$0xf]
    %v232 = vld [vmem:[%s2 + $0x204] sm:$0xff]
    %v233 = vld [vmem:[%s2 + $0x20c] sm:$0xf]
    %v234 = vld [vmem:[%s2 + $0x210] sm:$0xff]
    %v235 = vld [vmem:[%s2 + $0x218] sm:$0xf]
    %v236 = vld [vmem:[%s2 + $0x21c] sm:$0xff]
    %v237 = vld [vmem:[%s2 + $0x224] sm:$0xf]
    %v238 = vld [vmem:[%s2 + $0x228] sm:$0xff]
    %v239 = vld [vmem:[%s2 + $0x230] sm:$0xf]
    %v240 = vld [vmem:[%s2 + $0x234] sm:$0xff]
    %v241 = vld [vmem:[%s2 + $0x23c] sm:$0xf]
    %v242 = vld [vmem:[%s2 + $0x240] sm:$0xff]
    %v243 = vld [vmem:[%s2 + $0x248] sm:$0xf]
    %v244 = vld [vmem:[%s2 + $0x24c] sm:$0xff]
    %v245 = vld [vmem:[%s2 + $0x254] sm:$0xf]
    %v246 = vld [vmem:[%s2 + $0x258] sm:$0xff]
    %v247 = vld [vmem:[%s2 + $0x260] sm:$0xf]
    %v248 = vld [vmem:[%s2 + $0x264] sm:$0xff]
    %v249 = vld [vmem:[%s2 + $0x26c] sm:$0xf]
    %v250 = vld [vmem:[%s2 + $0x270] sm:$0xff]
    %v251 = vld [vmem:[%s2 + $0x278] sm:$0xf]
    %v252 = vld [vmem:[%s2 + $0x27c] sm:$0xff]
    %v253 = vld [vmem:[%s2 + $0x284] sm:$0xf]
    %v254 = vld [vmem:[%s2 + $0x288] sm:$0xff]
    %v255 = vld [vmem:[%s2 + $0x290] sm:$0xf]
    %v256 = vld [vmem:[%s2 + $0x294] sm:$0xff]
    %v257 = vld [vmem:[%s2 + $0x29c] sm:$0xf]
    %v258 = vld [vmem:[%s2 + $0x2a0] sm:$0xff]
    %v259 = vld [vmem:[%s2 + $0x2a8] sm:$0xf]
    %v260 = vld [vmem:[%s2 + $0x2ac] sm:$0xff]
    %v261 = vld [vmem:[%s2 + $0x2b4] sm:$0xf]
    %v262 = vld [vmem:[%s2 + $0x2b8] sm:$0xff]
    %v263 = vld [vmem:[%s2 + $0x2c0] sm:$0xf]
    %v264 = vld [vmem:[%s2 + $0x2c4] sm:$0xff]
    %v265 = vld [vmem:[%s2 + $0x2cc] sm:$0xf]
    %v266 = vld [vmem:[%s2 + $0x2d0] sm:$0xff]
    %v267 = vld [vmem:[%s2 + $0x2d8] sm:$0xf]
    %v268 = vld [vmem:[%s2 + $0x2dc] sm:$0xff]
    %v269 = vld [vmem:[%s2 + $0x2e4] sm:$0xf]
    %v270 = vld [vmem:[%s2 + $0x2e8] sm:$0xff]
    %v271 = vld [vmem:[%s2 + $0x2f0] sm:$0xf]
    %v272 = vld [vmem:[%s2 + $0x2f4] sm:$0xff]
    %v273 = vld [vmem:[%s2 + $0x2fc] sm:$0xf]
    %v274 = vld [vmem:[%s2 + $0x300] sm:$0xff]
    %v275 = vld [vmem:[%s2 + $0x308] sm:$0xf]
    %v276 = vld [vmem:[%s2 + $0x30c] sm:$0xff]
    %v277 = vld [vmem:[%s2 + $0x314] sm:$0xf]
    %v278 = vld [vmem:[%s2 + $0x318] sm:$0xff]
    %v279 = vld [vmem:[%s2 + $0x320] sm:$0xf]
    %v280 = vld [vmem:[%s2 + $0x324] sm:$0xff]
    %v281 = vld [vmem:[%s2 + $0x32c] sm:$0xf]
    %v282 = vld [vmem:[%s2 + $0x330] sm:$0xff]
    %v283 = vld [vmem:[%s2 + $0x338] sm:$0xf]
    %v284 = vld [vmem:[%s2 + $0x33c] sm:$0xff]
    %v285 = vld [vmem:[%s2 + $0x344] sm:$0xf]
    %v286 = vld [vmem:[%s2 + $0x348] sm:$0xff]
    %v287 = vld [vmem:[%s2 + $0x350] sm:$0xf]
    %v288 = vld [vmem:[%s2 + $0x354] sm:$0xff]
    %v289 = vld [vmem:[%s2 + $0x35c] sm:$0xf]
    %v290 = vld [vmem:[%s2 + $0x360] sm:$0xff]
    %v291 = vld [vmem:[%s2 + $0x368] sm:$0xf]
    %v292 = vld [vmem:[%s2 + $0x36c] sm:$0xff]
    %v293 = vld [vmem:[%s2 + $0x374] sm:$0xf]
    %v294 = vld [vmem:[%s2 + $0x378] sm:$0xff]
    %v295 = vld [vmem:[%s2 + $0x380] sm:$0xf]
    %v296 = vld [vmem:[%s2 + $0x384] sm:$0xff]
    %v297 = vld [vmem:[%s2 + $0x38c] sm:$0xf]
    %v298 = vld [vmem:[%s2 + $0x390] sm:$0xff]
    %v299 = vld [vmem:[%s2 + $0x398] sm:$0xf]
    %v300 = vld [vmem:[%s2 + $0x39c] sm:$0xff]
    %v301 = vld [vmem:[%s2 + $0x3a4] sm:$0xf]
    %v302 = vld [vmem:[%s2 + $0x3a8] sm:$0xff]
    %v303 = vld [vmem:[%s2 + $0x3b0] sm:$0xf]
    %v304 = vld [vmem:[%s2 + $0x3b4] sm:$0xff]
    %v305 = vld [vmem:[%s2 + $0x3bc] sm:$0xf]
    %v306 = vld [vmem:[%s2 + $0x3c0] sm:$0xff]
    %v307 = vld [vmem:[%s2 + $0x3c8] sm:$0xf]
    %v308 = vld [vmem:[%s2 + $0x3cc] sm:$0xff]
    %v309 = vld [vmem:[%s2 + $0x3d4] sm:$0xf]
    %v310 = vld [vmem:[%s2 + $0x3d8] sm:$0xff]
    %v311 = vld [vmem:[%s2 + $0x3e0] sm:$0xf]
    %v312 = vld [vmem:[%s2 + $0x3e4] sm:$0xff]
    %v313 = vld [vmem:[%s2 + $0x3ec] sm:$0xf]
    %v314 = vld [vmem:[%s2 + $0x3f0] sm:$0xff]
    %v315 = vld [vmem:[%s2 + $0x3f8] sm:$0xf]
    %v316 = vld [vmem:[%s2 + $0x3fc] sm:$0xff]
    %v317 = vld [vmem:[%s2 + $0x404] sm:$0xf]
    %v318 = vld [vmem:[%s2 + $0x408] sm:$0xff]
    %v319 = vld [vmem:[%s2 + $0x410] sm:$0xf]
    %v320 = vld [vmem:[%s2 + $0x414] sm:$0xff]
    %v321 = vld [vmem:[%s2 + $0x41c] sm:$0xf]
    %v322 = vld [vmem:[%s2 + $0x420] sm:$0xff]
    %v323 = vld [vmem:[%s2 + $0x428] sm:$0xf]
    %v324 = vld [vmem:[%s2 + $0x42c] sm:$0xff]
    %v325 = vld [vmem:[%s2 + $0x434] sm:$0xf]
    %v326 = vld [vmem:[%s2 + $0x438] sm:$0xff]
    %v327 = vld [vmem:[%s2 + $0x440] sm:$0xf]
    %v328 = vld [vmem:[%s2 + $0x444] sm:$0xff]
    %v329 = vld [vmem:[%s2 + $0x44c] sm:$0xf]
    %v330 = vld [vmem:[%s2 + $0x450] sm:$0xff]
    %v331 = vld [vmem:[%s2 + $0x458] sm:$0xf]
    %v332 = vld [vmem:[%s2 + $0x45c] sm:$0xff]
    %v333 = vld [vmem:[%s2 + $0x464] sm:$0xf]
    %v334 = vld [vmem:[%s2 + $0x468] sm:$0xff]
    %v335 = vld [vmem:[%s2 + $0x470] sm:$0xf]
    %v336 = vld [vmem:[%s2 + $0x474] sm:$0xff]
    %v337 = vld [vmem:[%s2 + $0x47c] sm:$0xf]
    %v338 = vld [vmem:[%s3] sm:$0x7]
    %v340 = vlaneseq
    %v341 = vshrl.u32 %v340, 7
    %v342 = vsub.s32 0, %v341
    %v343 = vrot.slane %v338, %v342
    %v344 = vlaneseq
    %v345 = vshrl.u32 %v344, 7
    %v346 = vsub.s32 1, %v345
    %v347 = vrot.slane %v338, %v346
    %v348 = vlaneseq
    %v349 = vshrl.u32 %v348, 7
    %v350 = vsub.s32 2, %v349
    %v351 = vrot.slane %v338, %v350
    %v547 = vunpack.c.l.b16 %v146
    %v548 = vunpack.c.h.b16 %v146
    %v549 = vunpack.c.l.b16 %v147
    %v550 = vunpack.c.l.b16 %v148
    %v551 = vunpack.c.h.b16 %v148
    %v552 = vunpack.c.l.b16 %v149
    %v553 = vunpack.c.l.b16 %v150
    %v554 = vunpack.c.h.b16 %v150
    %v555 = vunpack.c.l.b16 %v151
    %v556 = vunpack.c.l.b16 %v152
    %v557 = vunpack.c.h.b16 %v152
    %v558 = vunpack.c.l.b16 %v153
    %v559 = vunpack.c.l.b16 %v154
    %v560 = vunpack.c.h.b16 %v154
    %v561 = vunpack.c.l.b16 %v155
    %v562 = vunpack.c.l.b16 %v156
    %v563 = vunpack.c.h.b16 %v156
    %v564 = vunpack.c.l.b16 %v157
    %v565 = vunpack.c.l.b16 %v158
    %v566 = vunpack.c.h.b16 %v158
    %v567 = vunpack.c.l.b16 %v159
    %v568 = vunpack.c.l.b16 %v160
    %v569 = vunpack.c.h.b16 %v160
    %v570 = vunpack.c.l.b16 %v161
    %v571 = vunpack.c.l.b16 %v162
    %v572 = vunpack.c.h.b16 %v162
    %v573 = vunpack.c.l.b16 %v163
    %v574 = vunpack.c.l.b16 %v164
    %v575 = vunpack.c.h.b16 %v164
    %v576 = vunpack.c.l.b16 %v165
    %v577 = vunpack.c.l.b16 %v166
    %v578 = vunpack.c.h.b16 %v166
    %v579 = vunpack.c.l.b16 %v167
    %v580 = vunpack.c.l.b16 %v168
    %v581 = vunpack.c.h.b16 %v168
    %v582 = vunpack.c.l.b16 %v169
    %v583 = vunpack.c.l.b16 %v170
    %v584 = vunpack.c.h.b16 %v170
    %v585 = vunpack.c.l.b16 %v171
    %v586 = vunpack.c.l.b16 %v172
    %v587 = vunpack.c.h.b16 %v172
    %v588 = vunpack.c.l.b16 %v173
    %v589 = vunpack.c.l.b16 %v174
    %v590 = vunpack.c.h.b16 %v174
    %v591 = vunpack.c.l.b16 %v175
    %v592 = vunpack.c.l.b16 %v176
    %v593 = vunpack.c.h.b16 %v176
    %v594 = vunpack.c.l.b16 %v177
    %v595 = vunpack.c.l.b16 %v178
    %v596 = vunpack.c.h.b16 %v178
    %v597 = vunpack.c.l.b16 %v179
    %v598 = vunpack.c.l.b16 %v180
    %v599 = vunpack.c.h.b16 %v180
    %v600 = vunpack.c.l.b16 %v181
    %v601 = vunpack.c.l.b16 %v182
    %v602 = vunpack.c.h.b16 %v182
    %v603 = vunpack.c.l.b16 %v183
    %v604 = vunpack.c.l.b16 %v184
    %v605 = vunpack.c.h.b16 %v184
    %v606 = vunpack.c.l.b16 %v185
    %v607 = vunpack.c.l.b16 %v186
    %v608 = vunpack.c.h.b16 %v186
    %v609 = vunpack.c.l.b16 %v187
    %v610 = vunpack.c.l.b16 %v188
    %v611 = vunpack.c.h.b16 %v188
    %v612 = vunpack.c.l.b16 %v189
    %v613 = vunpack.c.l.b16 %v190
    %v614 = vunpack.c.h.b16 %v190
    %v615 = vunpack.c.l.b16 %v191
    %v616 = vunpack.c.l.b16 %v192
    %v617 = vunpack.c.h.b16 %v192
    %v618 = vunpack.c.l.b16 %v193
    %v619 = vunpack.c.l.b16 %v194
    %v620 = vunpack.c.h.b16 %v194
    %v621 = vunpack.c.l.b16 %v195
    %v622 = vunpack.c.l.b16 %v196
    %v623 = vunpack.c.h.b16 %v196
    %v624 = vunpack.c.l.b16 %v197
    %v625 = vunpack.c.l.b16 %v198
    %v626 = vunpack.c.h.b16 %v198
    %v627 = vunpack.c.l.b16 %v199
    %v628 = vunpack.c.l.b16 %v200
    %v629 = vunpack.c.h.b16 %v200
    %v630 = vunpack.c.l.b16 %v201
    %v631 = vunpack.c.l.b16 %v202
    %v632 = vunpack.c.h.b16 %v202
    %v633 = vunpack.c.l.b16 %v203
    %v634 = vunpack.c.l.b16 %v204
    %v635 = vunpack.c.h.b16 %v204
    %v636 = vunpack.c.l.b16 %v205
    %v637 = vunpack.c.l.b16 %v206
    %v638 = vunpack.c.h.b16 %v206
    %v639 = vunpack.c.l.b16 %v207
    %v640 = vunpack.c.l.b16 %v208
    %v641 = vunpack.c.h.b16 %v208
    %v642 = vunpack.c.l.b16 %v209
    %v643 = vunpack.c.l.b16 %v210
    %v644 = vunpack.c.h.b16 %v210
    %v645 = vunpack.c.l.b16 %v211
    %v646 = vunpack.c.l.b16 %v212
    %v647 = vunpack.c.h.b16 %v212
    %v648 = vunpack.c.l.b16 %v213
    %v649 = vunpack.c.l.b16 %v214
    %v650 = vunpack.c.h.b16 %v214
    %v651 = vunpack.c.l.b16 %v215
    %v652 = vunpack.c.l.b16 %v216
    %v653 = vunpack.c.h.b16 %v216
    %v654 = vunpack.c.l.b16 %v217
    %v655 = vunpack.c.l.b16 %v218
    %v656 = vunpack.c.h.b16 %v218
    %v657 = vunpack.c.l.b16 %v219
    %v658 = vunpack.c.l.b16 %v220
    %v659 = vunpack.c.h.b16 %v220
    %v660 = vunpack.c.l.b16 %v221
    %v661 = vunpack.c.l.b16 %v222
    %v662 = vunpack.c.h.b16 %v222
    %v663 = vunpack.c.l.b16 %v223
    %v664 = vunpack.c.l.b16 %v224
    %v665 = vunpack.c.h.b16 %v224
    %v666 = vunpack.c.l.b16 %v225
    %v667 = vunpack.c.l.b16 %v226
    %v668 = vunpack.c.h.b16 %v226
    %v669 = vunpack.c.l.b16 %v227
    %v670 = vunpack.c.l.b16 %v228
    %v671 = vunpack.c.h.b16 %v228
    %v672 = vunpack.c.l.b16 %v229
    %v673 = vunpack.c.l.b16 %v230
    %v674 = vunpack.c.h.b16 %v230
    %v675 = vunpack.c.l.b16 %v231
    %v676 = vunpack.c.l.b16 %v232
    %v677 = vunpack.c.h.b16 %v232
    %v678 = vunpack.c.l.b16 %v233
    %v679 = vunpack.c.l.b16 %v234
    %v680 = vunpack.c.h.b16 %v234
    %v681 = vunpack.c.l.b16 %v235
    %v682 = vunpack.c.l.b16 %v236
    %v683 = vunpack.c.h.b16 %v236
    %v684 = vunpack.c.l.b16 %v237
    %v685 = vunpack.c.l.b16 %v238
    %v686 = vunpack.c.h.b16 %v238
    %v687 = vunpack.c.l.b16 %v239
    %v688 = vunpack.c.l.b16 %v240
    %v689 = vunpack.c.h.b16 %v240
    %v690 = vunpack.c.l.b16 %v241
    %v691 = vunpack.c.l.b16 %v242
    %v692 = vunpack.c.h.b16 %v242
    %v693 = vunpack.c.l.b16 %v243
    %v694 = vunpack.c.l.b16 %v244
    %v695 = vunpack.c.h.b16 %v244
    %v696 = vunpack.c.l.b16 %v245
    %v697 = vunpack.c.l.b16 %v246
    %v698 = vunpack.c.h.b16 %v246
    %v699 = vunpack.c.l.b16 %v247
    %v700 = vunpack.c.l.b16 %v248
    %v701 = vunpack.c.h.b16 %v248
    %v702 = vunpack.c.l.b16 %v249
    %v703 = vunpack.c.l.b16 %v250
    %v704 = vunpack.c.h.b16 %v250
    %v705 = vunpack.c.l.b16 %v251
    %v706 = vunpack.c.l.b16 %v252
    %v707 = vunpack.c.h.b16 %v252
    %v708 = vunpack.c.l.b16 %v253
    %v709 = vunpack.c.l.b16 %v254
    %v710 = vunpack.c.h.b16 %v254
    %v711 = vunpack.c.l.b16 %v255
    %v712 = vunpack.c.l.b16 %v256
    %v713 = vunpack.c.h.b16 %v256
    %v714 = vunpack.c.l.b16 %v257
    %v715 = vunpack.c.l.b16 %v258
    %v716 = vunpack.c.h.b16 %v258
    %v717 = vunpack.c.l.b16 %v259
    %v718 = vunpack.c.l.b16 %v260
    %v719 = vunpack.c.h.b16 %v260
    %v720 = vunpack.c.l.b16 %v261
    %v721 = vunpack.c.l.b16 %v262
    %v722 = vunpack.c.h.b16 %v262
    %v723 = vunpack.c.l.b16 %v263
    %v724 = vunpack.c.l.b16 %v264
    %v725 = vunpack.c.h.b16 %v264
    %v726 = vunpack.c.l.b16 %v265
    %v727 = vunpack.c.l.b16 %v266
    %v728 = vunpack.c.h.b16 %v266
    %v729 = vunpack.c.l.b16 %v267
    %v730 = vunpack.c.l.b16 %v268
    %v731 = vunpack.c.h.b16 %v268
    %v732 = vunpack.c.l.b16 %v269
    %v733 = vunpack.c.l.b16 %v270
    %v734 = vunpack.c.h.b16 %v270
    %v735 = vunpack.c.l.b16 %v271
    %v736 = vunpack.c.l.b16 %v272
    %v737 = vunpack.c.h.b16 %v272
    %v738 = vunpack.c.l.b16 %v273
    %v739 = vunpack.c.l.b16 %v274
    %v740 = vunpack.c.h.b16 %v274
    %v741 = vunpack.c.l.b16 %v275
    %v742 = vunpack.c.l.b16 %v276
    %v743 = vunpack.c.h.b16 %v276
    %v744 = vunpack.c.l.b16 %v277
    %v745 = vunpack.c.l.b16 %v278
    %v746 = vunpack.c.h.b16 %v278
    %v747 = vunpack.c.l.b16 %v279
    %v748 = vunpack.c.l.b16 %v280
    %v749 = vunpack.c.h.b16 %v280
    %v750 = vunpack.c.l.b16 %v281
    %v751 = vunpack.c.l.b16 %v282
    %v752 = vunpack.c.h.b16 %v282
    %v753 = vunpack.c.l.b16 %v283
    %v754 = vunpack.c.l.b16 %v284
    %v755 = vunpack.c.h.b16 %v284
    %v756 = vunpack.c.l.b16 %v285
    %v757 = vunpack.c.l.b16 %v286
    %v758 = vunpack.c.h.b16 %v286
    %v759 = vunpack.c.l.b16 %v287
    %v760 = vunpack.c.l.b16 %v288
    %v761 = vunpack.c.h.b16 %v288
    %v762 = vunpack.c.l.b16 %v289
    %v763 = vunpack.c.l.b16 %v290
    %v764 = vunpack.c.h.b16 %v290
    %v765 = vunpack.c.l.b16 %v291
    %v766 = vunpack.c.l.b16 %v292
    %v767 = vunpack.c.h.b16 %v292
    %v768 = vunpack.c.l.b16 %v293
    %v769 = vunpack.c.l.b16 %v294
    %v770 = vunpack.c.h.b16 %v294
    %v771 = vunpack.c.l.b16 %v295
    %v772 = vunpack.c.l.b16 %v296
    %v773 = vunpack.c.h.b16 %v296
    %v774 = vunpack.c.l.b16 %v297
    %v775 = vunpack.c.l.b16 %v298
    %v776 = vunpack.c.h.b16 %v298
    %v777 = vunpack.c.l.b16 %v299
    %v778 = vunpack.c.l.b16 %v300
    %v779 = vunpack.c.h.b16 %v300
    %v780 = vunpack.c.l.b16 %v301
    %v781 = vunpack.c.l.b16 %v302
    %v782 = vunpack.c.h.b16 %v302
    %v783 = vunpack.c.l.b16 %v303
    %v784 = vunpack.c.l.b16 %v304
    %v785 = vunpack.c.h.b16 %v304
    %v786 = vunpack.c.l.b16 %v305
    %v787 = vunpack.c.l.b16 %v306
    %v788 = vunpack.c.h.b16 %v306
    %v789 = vunpack.c.l.b16 %v307
    %v790 = vunpack.c.l.b16 %v308
    %v791 = vunpack.c.h.b16 %v308
    %v792 = vunpack.c.l.b16 %v309
    %v793 = vunpack.c.l.b16 %v310
    %v794 = vunpack.c.h.b16 %v310
    %v795 = vunpack.c.l.b16 %v311
    %v796 = vunpack.c.l.b16 %v312
    %v797 = vunpack.c.h.b16 %v312
    %v798 = vunpack.c.l.b16 %v313
    %v799 = vunpack.c.l.b16 %v314
    %v800 = vunpack.c.h.b16 %v314
    %v801 = vunpack.c.l.b16 %v315
    %v802 = vunpack.c.l.b16 %v316
    %v803 = vunpack.c.h.b16 %v316
    %v804 = vunpack.c.l.b16 %v317
    %v805 = vunpack.c.l.b16 %v318
    %v806 = vunpack.c.h.b16 %v318
    %v807 = vunpack.c.l.b16 %v319
    %v808 = vunpack.c.l.b16 %v320
    %v809 = vunpack.c.h.b16 %v320
    %v810 = vunpack.c.l.b16 %v321
    %v811 = vunpack.c.l.b16 %v322
    %v812 = vunpack.c.h.b16 %v322
    %v813 = vunpack.c.l.b16 %v323
    %v814 = vunpack.c.l.b16 %v324
    %v815 = vunpack.c.h.b16 %v324
    %v816 = vunpack.c.l.b16 %v325
    %v817 = vunpack.c.l.b16 %v326
    %v818 = vunpack.c.h.b16 %v326
    %v819 = vunpack.c.l.b16 %v327
    %v820 = vunpack.c.l.b16 %v328
    %v821 = vunpack.c.h.b16 %v328
    %v822 = vunpack.c.l.b16 %v329
    %v823 = vunpack.c.l.b16 %v330
    %v824 = vunpack.c.h.b16 %v330
    %v825 = vunpack.c.l.b16 %v331
    %v826 = vunpack.c.l.b16 %v332
    %v827 = vunpack.c.h.b16 %v332
    %v828 = vunpack.c.l.b16 %v333
    %v829 = vunpack.c.l.b16 %v334
    %v830 = vunpack.c.h.b16 %v334
    %v831 = vunpack.c.l.b16 %v335
    %v832 = vunpack.c.l.b16 %v336
    %v833 = vunpack.c.h.b16 %v336
    %v834 = vunpack.c.l.b16 %v337
    %v835 = vpack.c.b16 %v550, %v547
    %v836 = vpack.c.b16 %v551, %v548
    %v837 = vpack.c.b16 %v552, %v549
    %v838 = vpack.c.b16 %v556, %v553
    %v839 = vpack.c.b16 %v557, %v554
    %v840 = vpack.c.b16 %v558, %v555
    %v841 = vpack.c.b16 %v562, %v559
    %v842 = vpack.c.b16 %v563, %v560
    %v843 = vpack.c.b16 %v564, %v561
    %v844 = vpack.c.b16 %v568, %v565
    %v845 = vpack.c.b16 %v569, %v566
    %v846 = vpack.c.b16 %v570, %v567
    %v847 = vpack.c.b16 %v574, %v571
    %v848 = vpack.c.b16 %v575, %v572
    %v849 = vpack.c.b16 %v576, %v573
    %v850 = vpack.c.b16 %v580, %v577
    %v851 = vpack.c.b16 %v581, %v578
    %v852 = vpack.c.b16 %v582, %v579
    %v853 = vpack.c.b16 %v586, %v583
    %v854 = vpack.c.b16 %v587, %v584
    %v855 = vpack.c.b16 %v588, %v585
    %v856 = vpack.c.b16 %v592, %v589
    %v857 = vpack.c.b16 %v593, %v590
    %v858 = vpack.c.b16 %v594, %v591
    %v859 = vpack.c.b16 %v598, %v595
    %v860 = vpack.c.b16 %v599, %v596
    %v861 = vpack.c.b16 %v600, %v597
    %v862 = vpack.c.b16 %v604, %v601
    %v863 = vpack.c.b16 %v605, %v602
    %v864 = vpack.c.b16 %v606, %v603
    %v865 = vpack.c.b16 %v610, %v607
    %v866 = vpack.c.b16 %v611, %v608
    %v867 = vpack.c.b16 %v612, %v609
    %v868 = vpack.c.b16 %v616, %v613
    %v869 = vpack.c.b16 %v617, %v614
    %v870 = vpack.c.b16 %v618, %v615
    %v871 = vpack.c.b16 %v622, %v619
    %v872 = vpack.c.b16 %v623, %v620
    %v873 = vpack.c.b16 %v624, %v621
    %v874 = vpack.c.b16 %v628, %v625
    %v875 = vpack.c.b16 %v629, %v626
    %v876 = vpack.c.b16 %v630, %v627
    %v877 = vpack.c.b16 %v634, %v631
    %v878 = vpack.c.b16 %v635, %v632
    %v879 = vpack.c.b16 %v636, %v633
    %v880 = vpack.c.b16 %v640, %v637
    %v881 = vpack.c.b16 %v641, %v638
    %v882 = vpack.c.b16 %v642, %v639
    %v883 = vpack.c.b16 %v646, %v643
    %v884 = vpack.c.b16 %v647, %v644
    %v885 = vpack.c.b16 %v648, %v645
    %v886 = vpack.c.b16 %v652, %v649
    %v887 = vpack.c.b16 %v653, %v650
    %v888 = vpack.c.b16 %v654, %v651
    %v889 = vpack.c.b16 %v658, %v655
    %v890 = vpack.c.b16 %v659, %v656
    %v891 = vpack.c.b16 %v660, %v657
    %v892 = vpack.c.b16 %v664, %v661
    %v893 = vpack.c.b16 %v665, %v662
    %v894 = vpack.c.b16 %v666, %v663
    %v895 = vpack.c.b16 %v670, %v667
    %v896 = vpack.c.b16 %v671, %v668
    %v897 = vpack.c.b16 %v672, %v669
    %v898 = vpack.c.b16 %v676, %v673
    %v899 = vpack.c.b16 %v677, %v674
    %v900 = vpack.c.b16 %v678, %v675
    %v901 = vpack.c.b16 %v682, %v679
    %v902 = vpack.c.b16 %v683, %v680
    %v903 = vpack.c.b16 %v684, %v681
    %v904 = vpack.c.b16 %v688, %v685
    %v905 = vpack.c.b16 %v689, %v686
    %v906 = vpack.c.b16 %v690, %v687
    %v907 = vpack.c.b16 %v694, %v691
    %v908 = vpack.c.b16 %v695, %v692
    %v909 = vpack.c.b16 %v696, %v693
    %v910 = vpack.c.b16 %v700, %v697
    %v911 = vpack.c.b16 %v701, %v698
    %v912 = vpack.c.b16 %v702, %v699
    %v913 = vpack.c.b16 %v706, %v703
    %v914 = vpack.c.b16 %v707, %v704
    %v915 = vpack.c.b16 %v708, %v705
    %v916 = vpack.c.b16 %v712, %v709
    %v917 = vpack.c.b16 %v713, %v710
    %v918 = vpack.c.b16 %v714, %v711
    %v919 = vpack.c.b16 %v718, %v715
    %v920 = vpack.c.b16 %v719, %v716
    %v921 = vpack.c.b16 %v720, %v717
    %v922 = vpack.c.b16 %v724, %v721
    %v923 = vpack.c.b16 %v725, %v722
    %v924 = vpack.c.b16 %v726, %v723
    %v925 = vpack.c.b16 %v730, %v727
    %v926 = vpack.c.b16 %v731, %v728
    %v927 = vpack.c.b16 %v732, %v729
    %v928 = vpack.c.b16 %v736, %v733
    %v929 = vpack.c.b16 %v737, %v734
    %v930 = vpack.c.b16 %v738, %v735
    %v931 = vpack.c.b16 %v742, %v739
    %v932 = vpack.c.b16 %v743, %v740
    %v933 = vpack.c.b16 %v744, %v741
    %v934 = vpack.c.b16 %v748, %v745
    %v935 = vpack.c.b16 %v749, %v746
    %v936 = vpack.c.b16 %v750, %v747
    %v937 = vpack.c.b16 %v754, %v751
    %v938 = vpack.c.b16 %v755, %v752
    %v939 = vpack.c.b16 %v756, %v753
    %v940 = vpack.c.b16 %v760, %v757
    %v941 = vpack.c.b16 %v761, %v758
    %v942 = vpack.c.b16 %v762, %v759
    %v943 = vpack.c.b16 %v766, %v763
    %v944 = vpack.c.b16 %v767, %v764
    %v945 = vpack.c.b16 %v768, %v765
    %v946 = vpack.c.b16 %v772, %v769
    %v947 = vpack.c.b16 %v773, %v770
    %v948 = vpack.c.b16 %v774, %v771
    %v949 = vpack.c.b16 %v778, %v775
    %v950 = vpack.c.b16 %v779, %v776
    %v951 = vpack.c.b16 %v780, %v777
    %v952 = vpack.c.b16 %v784, %v781
    %v953 = vpack.c.b16 %v785, %v782
    %v954 = vpack.c.b16 %v786, %v783
    %v955 = vpack.c.b16 %v790, %v787
    %v956 = vpack.c.b16 %v791, %v788
    %v957 = vpack.c.b16 %v792, %v789
    %v958 = vpack.c.b16 %v796, %v793
    %v959 = vpack.c.b16 %v797, %v794
    %v960 = vpack.c.b16 %v798, %v795
    %v961 = vpack.c.b16 %v802, %v799
    %v962 = vpack.c.b16 %v803, %v800
    %v963 = vpack.c.b16 %v804, %v801
    %v964 = vpack.c.b16 %v808, %v805
    %v965 = vpack.c.b16 %v809, %v806
    %v966 = vpack.c.b16 %v810, %v807
    %v967 = vpack.c.b16 %v814, %v811
    %v968 = vpack.c.b16 %v815, %v812
    %v969 = vpack.c.b16 %v816, %v813
    %v970 = vpack.c.b16 %v820, %v817
    %v971 = vpack.c.b16 %v821, %v818
    %v972 = vpack.c.b16 %v822, %v819
    %v973 = vpack.c.b16 %v826, %v823
    %v974 = vpack.c.b16 %v827, %v824
    %v975 = vpack.c.b16 %v828, %v825
    %v976 = vpack.c.b16 %v832, %v829
    %v977 = vpack.c.b16 %v833, %v830
    %v978 = vpack.c.b16 %v834, %v831
    %1123 = vmatprep.subr.bf16.mxu0 %v857
    %1124 = vmatpush1.bf16.msra.mxu0 %v856
    %1125 = vmatprep.subr.bf16.mxu0 %v854
    %1126 = vmatpush1.bf16.msra.mxu0 %v853
    %1127 = vmatprep.subr.bf16.mxu0 %v851
    %1128 = vmatpush1.bf16.msra.mxu0 %v850
    %1129 = vmatprep.subr.bf16.mxu0 %v848
    %1130 = vmatpush1.bf16.msra.mxu0 %v847
    %1131 = vmatprep.subr.bf16.mxu0 %v845
    %1132 = vmatpush1.bf16.msra.mxu0 %v844
    %1133 = vmatprep.subr.bf16.mxu0 %v842
    %1134 = vmatpush1.bf16.msra.mxu0 %v841
    %1135 = vmatprep.subr.bf16.mxu0 %v839
    %1136 = vmatpush1.bf16.msra.mxu0 %v838
    %1137 = vmatprep.subr.bf16.mxu0 %v836
    %1138 = vmatpush1.bf16.msra.mxu0 %v835
    %1139 = vmatprep.subr.bf16.mxu0 %v881
    %1140 = vmatpush2.bf16.msra.mxu0 %v880
    %1141 = vmatprep.subr.bf16.mxu0 %v878
    %1142 = vmatpush2.bf16.msra.mxu0 %v877
    %1143 = vmatprep.subr.bf16.mxu0 %v875
    %1144 = vmatpush2.bf16.msra.mxu0 %v874
    %1145 = vmatprep.subr.bf16.mxu0 %v872
    %1146 = vmatpush2.bf16.msra.mxu0 %v871
    %1147 = vmatprep.subr.bf16.mxu0 %v869
    %1148 = vmatpush2.bf16.msra.mxu0 %v868
    %1149 = vmatprep.subr.bf16.mxu0 %v866
    %1150 = vmatpush2.bf16.msra.mxu0 %v865
    %1151 = vmatprep.subr.bf16.mxu0 %v863
    %1152 = vmatpush2.bf16.msra.mxu0 %v862
    %1153 = vmatprep.subr.bf16.mxu0 %v860
    %1154 = vmatpush2.bf16.msra.mxu0 %v859
    %1155 = vmatprep.mubr.bf16.mxu0 %v141
    %1156 = vmatmul.mubr.bf16.gmra.mxu0 %v140
    %v1157 = vpop.f32.mrf.mxu0
    %v1158 = vadd.f32 %v343, %v1157
    %v1159 = vpop.f32.mrf.mxu0
    %v1160 = vadd.f32 %v347, %v1159
    %v1161 = vpop.f32.mrf.mxu0
    %v1162 = vpop.f32.mrf.mxu0
    %1163 = vdwg.mxu0
    %1164 = vmatprep.subr.bf16.mxu0 %v905
    %1165 = vmatpush1.bf16.msra.mxu0 %v904
    %1166 = vmatprep.subr.bf16.mxu0 %v902
    %1167 = vmatpush1.bf16.msra.mxu0 %v901
    %1168 = vmatprep.subr.bf16.mxu0 %v899
    %1169 = vmatpush1.bf16.msra.mxu0 %v898
    %1170 = vmatprep.subr.bf16.mxu0 %v896
    %1171 = vmatpush1.bf16.msra.mxu0 %v895
    %1172 = vmatprep.subr.bf16.mxu0 %v893
    %1173 = vmatpush1.bf16.msra.mxu0 %v892
    %1174 = vmatprep.subr.bf16.mxu0 %v890
    %1175 = vmatpush1.bf16.msra.mxu0 %v889
    %1176 = vmatprep.subr.bf16.mxu0 %v887
    %1177 = vmatpush1.bf16.msra.mxu0 %v886
    %1178 = vmatprep.subr.bf16.mxu0 %v884
    %1179 = vmatpush1.bf16.msra.mxu0 %v883
    %1180 = vmatprep.subr.bf16.mxu0 %v929
    %1181 = vmatpush2.bf16.msra.mxu0 %v928
    %1182 = vmatprep.subr.bf16.mxu0 %v926
    %1183 = vmatpush2.bf16.msra.mxu0 %v925
    %1184 = vmatprep.subr.bf16.mxu0 %v923
    %1185 = vmatpush2.bf16.msra.mxu0 %v922
    %1186 = vmatprep.subr.bf16.mxu0 %v920
    %1187 = vmatpush2.bf16.msra.mxu0 %v919
    %1188 = vmatprep.subr.bf16.mxu0 %v917
    %1189 = vmatpush2.bf16.msra.mxu0 %v916
    %1190 = vmatprep.subr.bf16.mxu0 %v914
    %1191 = vmatpush2.bf16.msra.mxu0 %v913
    %1192 = vmatprep.subr.bf16.mxu0 %v911
    %1193 = vmatpush2.bf16.msra.mxu0 %v910
    %1194 = vmatprep.subr.bf16.mxu0 %v908
    %1195 = vmatpush2.bf16.msra.mxu0 %v907
    %1196 = vmatprep.mubr.bf16.mxu0 %v42
    %1197 = vmatmul.mubr.bf16.gmra.mxu0 %v142
    %v1198 = vpop.f32.mrf.mxu0
    %v1199 = vadd.f32 %v1158, %v1198
    %v1200 = vpop.f32.mrf.mxu0
    %v1201 = vadd.f32 %v1160, %v1200
    %v1202 = vpop.f32.mrf.mxu0
    %v1203 = vpop.f32.mrf.mxu0
    %1204 = vdwg.mxu0
    %1205 = vmatprep.subr.bf16.mxu0 %v953
    %1206 = vmatpush1.bf16.msra.mxu0 %v952
    %1207 = vmatprep.subr.bf16.mxu0 %v950
    %1208 = vmatpush1.bf16.msra.mxu0 %v949
    %1209 = vmatprep.subr.bf16.mxu0 %v947
    %1210 = vmatpush1.bf16.msra.mxu0 %v946
    %1211 = vmatprep.subr.bf16.mxu0 %v944
    %1212 = vmatpush1.bf16.msra.mxu0 %v943
    %1213 = vmatprep.subr.bf16.mxu0 %v941
    %1214 = vmatpush1.bf16.msra.mxu0 %v940
    %1215 = vmatprep.subr.bf16.mxu0 %v938
    %1216 = vmatpush1.bf16.msra.mxu0 %v937
    %1217 = vmatprep.subr.bf16.mxu0 %v935
    %1218 = vmatpush1.bf16.msra.mxu0 %v934
    %1219 = vmatprep.subr.bf16.mxu0 %v932
    %1220 = vmatpush1.bf16.msra.mxu0 %v931
    %1221 = vmatprep.subr.bf16.mxu0 %v977
    %1222 = vmatpush2.bf16.msra.mxu0 %v976
    %1223 = vmatprep.subr.bf16.mxu0 %v974
    %1224 = vmatpush2.bf16.msra.mxu0 %v973
    %1225 = vmatprep.subr.bf16.mxu0 %v971
    %1226 = vmatpush2.bf16.msra.mxu0 %v970
    %1227 = vmatprep.subr.bf16.mxu0 %v968
    %1228 = vmatpush2.bf16.msra.mxu0 %v967
    %1229 = vmatprep.subr.bf16.mxu0 %v965
    %1230 = vmatpush2.bf16.msra.mxu0 %v964
    %1231 = vmatprep.subr.bf16.mxu0 %v962
    %1232 = vmatpush2.bf16.msra.mxu0 %v961
    %1233 = vmatprep.subr.bf16.mxu0 %v959
    %1234 = vmatpush2.bf16.msra.mxu0 %v958
    %1235 = vmatprep.subr.bf16.mxu0 %v956
    %1236 = vmatpush2.bf16.msra.mxu0 %v955
    %1237 = vmatprep.mubr.bf16.mxu0 %v44
    %1238 = vmatmul.mubr.bf16.gmra.mxu0 %v43
    %v1239 = vpop.f32.mrf.mxu0
    %v1240 = vadd.f32 %v1199, %v1239
    %v1241 = vpop.f32.mrf.mxu0
    %v1242 = vadd.f32 %v1201, %v1241
    %v1243 = vpop.f32.mrf.mxu0
    %v1244 = vpop.f32.mrf.mxu0
    %1245 = vdwg.mxu0
    %1246 = vmatprep.subr.bf16.mxu0 0
    %1247 = vmatpush1.bf16.msra.mxu0 %v858
    %1248 = vmatprep.subr.bf16.mxu0 0
    %1249 = vmatpush1.bf16.msra.mxu0 %v855
    %1250 = vmatprep.subr.bf16.mxu0 0
    %1251 = vmatpush1.bf16.msra.mxu0 %v852
    %1252 = vmatprep.subr.bf16.mxu0 0
    %1253 = vmatpush1.bf16.msra.mxu0 %v849
    %1254 = vmatprep.subr.bf16.mxu0 0
    %1255 = vmatpush1.bf16.msra.mxu0 %v846
    %1256 = vmatprep.subr.bf16.mxu0 0
    %1257 = vmatpush1.bf16.msra.mxu0 %v843
    %1258 = vmatprep.subr.bf16.mxu0 0
    %1259 = vmatpush1.bf16.msra.mxu0 %v840
    %1260 = vmatprep.subr.bf16.mxu0 0
    %1261 = vmatpush1.bf16.msra.mxu0 %v837
    %1262 = vmatprep.subr.bf16.mxu0 0
    %1263 = vmatpush2.bf16.msra.mxu0 %v882
    %1264 = vmatprep.subr.bf16.mxu0 0
    %1265 = vmatpush2.bf16.msra.mxu0 %v879
    %1266 = vmatprep.subr.bf16.mxu0 0
    %1267 = vmatpush2.bf16.msra.mxu0 %v876
    %1268 = vmatprep.subr.bf16.mxu0 0
    %1269 = vmatpush2.bf16.msra.mxu0 %v873
    %1270 = vmatprep.subr.bf16.mxu0 0
    %1271 = vmatpush2.bf16.msra.mxu0 %v870
    %1272 = vmatprep.subr.bf16.mxu0 0
    %1273 = vmatpush2.bf16.msra.mxu0 %v867
    %1274 = vmatprep.subr.bf16.mxu0 0
    %1275 = vmatpush2.bf16.msra.mxu0 %v864
    %1276 = vmatprep.subr.bf16.mxu0 0
    %1277 = vmatpush2.bf16.msra.mxu0 %v861
    %1278 = vmatprep.mubr.bf16.mxu0 %v141
    %1279 = vmatmul.mubr.bf16.gmra.mxu0 %v140
    %v1280 = vpop.f32.mrf.mxu0
    %v1281 = vadd.f32 %v351, %v1280
    %v1282 = vpop.f32.mrf.mxu0
    %v1283 = vpop.f32.mrf.mxu0
    %v1284 = vpop.f32.mrf.mxu0
    %1285 = vdwg.mxu0
    %1286 = vmatprep.subr.bf16.mxu0 0
    %1287 = vmatpush1.bf16.msra.mxu0 %v906
    %1288 = vmatprep.subr.bf16.mxu0 0
    %1289 = vmatpush1.bf16.msra.mxu0 %v903
    %1290 = vmatprep.subr.bf16.mxu0 0
    %1291 = vmatpush1.bf16.msra.mxu0 %v900
    %1292 = vmatprep.subr.bf16.mxu0 0
    %1293 = vmatpush1.bf16.msra.mxu0 %v897
    %1294 = vmatprep.subr.bf16.mxu0 0
    %1295 = vmatpush1.bf16.msra.mxu0 %v894
    %1296 = vmatprep.subr.bf16.mxu0 0
    %1297 = vmatpush1.bf16.msra.mxu0 %v891
    %1298 = vmatprep.subr.bf16.mxu0 0
    %1299 = vmatpush1.bf16.msra.mxu0 %v888
    %1300 = vmatprep.subr.bf16.mxu0 0
    %1301 = vmatpush1.bf16.msra.mxu0 %v885
    %1302 = vmatprep.subr.bf16.mxu0 0
    %1303 = vmatpush2.bf16.msra.mxu0 %v930
    %1304 = vmatprep.subr.bf16.mxu0 0
    %1305 = vmatpush2.bf16.msra.mxu0 %v927
    %1306 = vmatprep.subr.bf16.mxu0 0
    %1307 = vmatpush2.bf16.msra.mxu0 %v924
    %1308 = vmatprep.subr.bf16.mxu0 0
    %1309 = vmatpush2.bf16.msra.mxu0 %v921
    %1310 = vmatprep.subr.bf16.mxu0 0
    %1311 = vmatpush2.bf16.msra.mxu0 %v918
    %1312 = vmatprep.subr.bf16.mxu0 0
    %1313 = vmatpush2.bf16.msra.mxu0 %v915
    %1314 = vmatprep.subr.bf16.mxu0 0
    %1315 = vmatpush2.bf16.msra.mxu0 %v912
    %1316 = vmatprep.subr.bf16.mxu0 0
    %1317 = vmatpush2.bf16.msra.mxu0 %v909
    %1318 = vmatprep.mubr.bf16.mxu0 %v42
    %1319 = vmatmul.mubr.bf16.gmra.mxu0 %v142
    %v1320 = vpop.f32.mrf.mxu0
    %v1321 = vadd.f32 %v1281, %v1320
    %v1322 = vpop.f32.mrf.mxu0
    %v1323 = vpop.f32.mrf.mxu0
    %v1324 = vpop.f32.mrf.mxu0
    %1325 = vdwg.mxu0
    %1326 = vmatprep.subr.bf16.mxu0 0
    %1327 = vmatpush1.bf16.msra.mxu0 %v954
    %1328 = vmatprep.subr.bf16.mxu0 0
    %1329 = vmatpush1.bf16.msra.mxu0 %v951
    %1330 = vmatprep.subr.bf16.mxu0 0
    %1331 = vmatpush1.bf16.msra.mxu0 %v948
    %1332 = vmatprep.subr.bf16.mxu0 0
    %1333 = vmatpush1.bf16.msra.mxu0 %v945
    %1334 = vmatprep.subr.bf16.mxu0 0
    %1335 = vmatpush1.bf16.msra.mxu0 %v942
    %1336 = vmatprep.subr.bf16.mxu0 0
    %1337 = vmatpush1.bf16.msra.mxu0 %v939
    %1338 = vmatprep.subr.bf16.mxu0 0
    %1339 = vmatpush1.bf16.msra.mxu0 %v936
    %1340 = vmatprep.subr.bf16.mxu0 0
    %1341 = vmatpush1.bf16.msra.mxu0 %v933
    %1342 = vmatprep.subr.bf16.mxu0 0
    %1343 = vmatpush2.bf16.msra.mxu0 %v978
    %1344 = vmatprep.subr.bf16.mxu0 0
    %1345 = vmatpush2.bf16.msra.mxu0 %v975
    %1346 = vmatprep.subr.bf16.mxu0 0
    %1347 = vmatpush2.bf16.msra.mxu0 %v972
    %1348 = vmatprep.subr.bf16.mxu0 0
    %1349 = vmatpush2.bf16.msra.mxu0 %v969
    %1350 = vmatprep.subr.bf16.mxu0 0
    %1351 = vmatpush2.bf16.msra.mxu0 %v966
    %1352 = vmatprep.subr.bf16.mxu0 0
    %1353 = vmatpush2.bf16.msra.mxu0 %v963
    %1354 = vmatprep.subr.bf16.mxu0 0
    %1355 = vmatpush2.bf16.msra.mxu0 %v960
    %1356 = vmatprep.subr.bf16.mxu0 0
    %1357 = vmatpush2.bf16.msra.mxu0 %v957
    %1358 = vmatprep.mubr.bf16.mxu0 %v44
    %1359 = vmatmul.mubr.bf16.gmra.mxu0 %v43
    %v1360 = vpop.f32.mrf.mxu0
    %v1361 = vadd.f32 %v1321, %v1360
    %v1362 = vpop.f32.mrf.mxu0
    %v1363 = vpop.f32.mrf.mxu0
    %v1364 = vpop.f32.mrf.mxu0
    %1365 = vdwg.mxu0
    %v1366 = vmax.f32 %v1240, 0.0
    %v1367 = vmax.f32 %v1242, 0.0
    %v1368 = vmax.f32 %v1361, 0.0
    %v1369 = vpack.c.bf16 %v1366, %v1366
    %v1370 = vpack.c.bf16 %v1367, %v1367
    %v1371 = vpack.c.bf16 %v1368, %v1368
    %v1373 = vsel %vm49, %v1369, 0
    %v1376 = vsel %vm49, %v1370, 0
    %v1379 = vsel %vm49, %v1371, 0
    %1381 = vmatprep.subr.bf16.mxu0 0
    %1382 = vmatpush1.bf16.msra.mxu0 0
    %1383 = vmatprep.subr.bf16.mxu0 0
    %1384 = vmatpush1.bf16.msra.mxu0 0
    %1385 = vmatprep.subr.bf16.mxu0 0
    %1386 = vmatpush1.bf16.msra.mxu0 0
    %1387 = vmatprep.subr.bf16.mxu0 0
    %1388 = vmatpush1.bf16.msra.mxu0 0
    %1389 = vmatprep.subr.bf16.mxu0 0
    %1390 = vmatpush1.bf16.msra.mxu0 0
    %1391 = vmatprep.subr.bf16.mxu0 0
    %1392 = vmatpush1.bf16.msra.mxu0 0
    %1393 = vmatprep.subr.bf16.mxu0 0
    %1394 = vmatpush1.bf16.msra.mxu0 0
    %1395 = vmatprep.subr.bf16.mxu0 %v1376
    %1396 = vmatpush1.bf16.msra.mxu0 %v1373
    %1397 = vmatprep.subr.bf16.mxu0 0
    %1398 = vmatpush2.bf16.msra.mxu0 0
    %1399 = vmatprep.subr.bf16.mxu0 0
    %1400 = vmatpush2.bf16.msra.mxu0 0
    %1401 = vmatprep.subr.bf16.mxu0 0
    %1402 = vmatpush2.bf16.msra.mxu0 0
    %1403 = vmatprep.subr.bf16.mxu0 0
    %1404 = vmatpush2.bf16.msra.mxu0 0
    %1405 = vmatprep.subr.bf16.mxu0 0
    %1406 = vmatpush2.bf16.msra.mxu0 0
    %1407 = vmatprep.subr.bf16.mxu0 0
    %1408 = vmatpush2.bf16.msra.mxu0 0
    %1409 = vmatprep.subr.bf16.mxu0 0
    %1410 = vmatpush2.bf16.msra.mxu0 0
    %1411 = vmatprep.subr.bf16.mxu0 0
    %1412 = vmatpush2.bf16.msra.mxu0 0
    %1413 = vmatprep.mubr.bf16.mxu0 0
    %1414 = vmatmul.mubr.bf16.gmra.mxu0 %v47
    %v1415 = vpop.f32.mrf.mxu0
    %v1416 = vadd.f32 0.0, %v1415
    %v1417 = vpop.f32.mrf.mxu0
    %v1418 = vadd.f32 0.0, %v1417
    %v1419 = vpop.f32.mrf.mxu0
    %v1420 = vpop.f32.mrf.mxu0
    %1421 = vdwg.mxu0
    %1422 = vmatprep.subr.bf16.mxu0 0
    %1423 = vmatpush1.bf16.msra.mxu0 0
    %1424 = vmatprep.subr.bf16.mxu0 0
    %1425 = vmatpush1.bf16.msra.mxu0 0
    %1426 = vmatprep.subr.bf16.mxu0 0
    %1427 = vmatpush1.bf16.msra.mxu0 0
    %1428 = vmatprep.subr.bf16.mxu0 0
    %1429 = vmatpush1.bf16.msra.mxu0 0
    %1430 = vmatprep.subr.bf16.mxu0 0
    %1431 = vmatpush1.bf16.msra.mxu0 0
    %1432 = vmatprep.subr.bf16.mxu0 0
    %1433 = vmatpush1.bf16.msra.mxu0 0
    %1434 = vmatprep.subr.bf16.mxu0 0
    %1435 = vmatpush1.bf16.msra.mxu0 0
    %1436 = vmatprep.subr.bf16.mxu0 0
    %1437 = vmatpush1.bf16.msra.mxu0 %v1379
    %1438 = vmatprep.subr.bf16.mxu0 0
    %1439 = vmatpush2.bf16.msra.mxu0 0
    %1440 = vmatprep.subr.bf16.mxu0 0
    %1441 = vmatpush2.bf16.msra.mxu0 0
    %1442 = vmatprep.subr.bf16.mxu0 0
    %1443 = vmatpush2.bf16.msra.mxu0 0
    %1444 = vmatprep.subr.bf16.mxu0 0
    %1445 = vmatpush2.bf16.msra.mxu0 0
    %1446 = vmatprep.subr.bf16.mxu0 0
    %1447 = vmatpush2.bf16.msra.mxu0 0
    %1448 = vmatprep.subr.bf16.mxu0 0
    %1449 = vmatpush2.bf16.msra.mxu0 0
    %1450 = vmatprep.subr.bf16.mxu0 0
    %1451 = vmatpush2.bf16.msra.mxu0 0
    %1452 = vmatprep.subr.bf16.mxu0 0
    %1453 = vmatpush2.bf16.msra.mxu0 0
    %1454 = vmatprep.mubr.bf16.mxu0 0
    %1455 = vmatmul.mubr.bf16.gmra.mxu0 %v47
    %v1456 = vpop.f32.mrf.mxu0
    %v1457 = vadd.f32 0.0, %v1456
    %v1458 = vpop.f32.mrf.mxu0
    %v1459 = vpop.f32.mrf.mxu0
    %v1460 = vpop.f32.mrf.mxu0
    %1461 = vdwg.mxu0
    %v1462 = vpack.c.bf16 %v1416, %v1416
    %v1463 = vpack.c.bf16 %v1418, %v1418
    %v1464 = vpack.c.bf16 %v1457, %v1457
    %v1465 = vld [vmem:[%s4] sm:$0xff]
    %v1466 = vld [vmem:[%s4 + $0x8] sm:$0xf]
    %v1467 = vld [vmem:[%s4 + $0xc] sm:$0xff]
    %v1468 = vld [vmem:[%s4 + $0x14] sm:$0xf]
    %v1469 = vld [vmem:[%s4 + $0x18] sm:$0xff]
    %v1470 = vld [vmem:[%s4 + $0x20] sm:$0xf]
    %v1471 = vld [vmem:[%s4 + $0x24] sm:$0xff]
    %v1472 = vld [vmem:[%s4 + $0x2c] sm:$0xf]
    %v1473 = vld [vmem:[%s4 + $0x30] sm:$0xff]
    %v1474 = vld [vmem:[%s4 + $0x38] sm:$0xf]
    %v1475 = vld [vmem:[%s4 + $0x3c] sm:$0xff]
    %v1476 = vld [vmem:[%s4 + $0x44] sm:$0xf]
    %v1477 = vld [vmem:[%s4 + $0x48] sm:$0xff]
    %v1478 = vld [vmem:[%s4 + $0x50] sm:$0xf]
    %v1479 = vld [vmem:[%s4 + $0x54] sm:$0xff]
    %v1480 = vld [vmem:[%s4 + $0x5c] sm:$0xf]
    %v1481 = vld [vmem:[%s4 + $0x60] sm:$0xff]
    %v1482 = vld [vmem:[%s4 + $0x68] sm:$0xf]
    %v1483 = vld [vmem:[%s4 + $0x6c] sm:$0xff]
    %v1484 = vld [vmem:[%s4 + $0x74] sm:$0xf]
    %v1485 = vld [vmem:[%s4 + $0x78] sm:$0xff]
    %v1486 = vld [vmem:[%s4 + $0x80] sm:$0xf]
    %v1487 = vld [vmem:[%s4 + $0x84] sm:$0xff]
    %v1488 = vld [vmem:[%s4 + $0x8c] sm:$0xf]
    %v1489 = vld [vmem:[%s4 + $0x90] sm:$0xff]
    %v1490 = vld [vmem:[%s4 + $0x98] sm:$0xf]
    %v1491 = vld [vmem:[%s4 + $0x9c] sm:$0xff]
    %v1492 = vld [vmem:[%s4 + $0xa4] sm:$0xf]
    %v1493 = vld [vmem:[%s4 + $0xa8] sm:$0xff]
    %v1494 = vld [vmem:[%s4 + $0xb0] sm:$0xf]
    %v1495 = vld [vmem:[%s4 + $0xb4] sm:$0xff]
    %v1496 = vld [vmem:[%s4 + $0xbc] sm:$0xf]
    %v1497 = vld [vmem:[%s4 + $0xc0] sm:$0xff]
    %v1498 = vld [vmem:[%s4 + $0xc8] sm:$0xf]
    %v1499 = vld [vmem:[%s4 + $0xcc] sm:$0xff]
    %v1500 = vld [vmem:[%s4 + $0xd4] sm:$0xf]
    %v1501 = vld [vmem:[%s4 + $0xd8] sm:$0xff]
    %v1502 = vld [vmem:[%s4 + $0xe0] sm:$0xf]
    %v1503 = vld [vmem:[%s4 + $0xe4] sm:$0xff]
    %v1504 = vld [vmem:[%s4 + $0xec] sm:$0xf]
    %v1505 = vld [vmem:[%s4 + $0xf0] sm:$0xff]
    %v1506 = vld [vmem:[%s4 + $0xf8] sm:$0xf]
    %v1507 = vld [vmem:[%s4 + $0xfc] sm:$0xff]
    %v1508 = vld [vmem:[%s4 + $0x104] sm:$0xf]
    %v1509 = vld [vmem:[%s4 + $0x108] sm:$0xff]
    %v1510 = vld [vmem:[%s4 + $0x110] sm:$0xf]
    %v1511 = vld [vmem:[%s4 + $0x114] sm:$0xff]
    %v1512 = vld [vmem:[%s4 + $0x11c] sm:$0xf]
    %v1513 = vld [vmem:[%s4 + $0x120] sm:$0xff]
    %v1514 = vld [vmem:[%s4 + $0x128] sm:$0xf]
    %v1515 = vld [vmem:[%s4 + $0x12c] sm:$0xff]
    %v1516 = vld [vmem:[%s4 + $0x134] sm:$0xf]
    %v1517 = vld [vmem:[%s4 + $0x138] sm:$0xff]
    %v1518 = vld [vmem:[%s4 + $0x140] sm:$0xf]
    %v1519 = vld [vmem:[%s4 + $0x144] sm:$0xff]
    %v1520 = vld [vmem:[%s4 + $0x14c] sm:$0xf]
    %v1521 = vld [vmem:[%s4 + $0x150] sm:$0xff]
    %v1522 = vld [vmem:[%s4 + $0x158] sm:$0xf]
    %v1523 = vld [vmem:[%s4 + $0x15c] sm:$0xff]
    %v1524 = vld [vmem:[%s4 + $0x164] sm:$0xf]
    %v1525 = vld [vmem:[%s4 + $0x168] sm:$0xff]
    %v1526 = vld [vmem:[%s4 + $0x170] sm:$0xf]
    %v1527 = vld [vmem:[%s4 + $0x174] sm:$0xff]
    %v1528 = vld [vmem:[%s4 + $0x17c] sm:$0xf]
    %v1529 = vld [vmem:[%s4 + $0x180] sm:$0xff]
    %v1530 = vld [vmem:[%s4 + $0x188] sm:$0xf]
    %v1531 = vld [vmem:[%s4 + $0x18c] sm:$0xff]
    %v1532 = vld [vmem:[%s4 + $0x194] sm:$0xf]
    %v1533 = vld [vmem:[%s4 + $0x198] sm:$0xff]
    %v1534 = vld [vmem:[%s4 + $0x1a0] sm:$0xf]
    %v1535 = vld [vmem:[%s4 + $0x1a4] sm:$0xff]
    %v1536 = vld [vmem:[%s4 + $0x1ac] sm:$0xf]
    %v1537 = vld [vmem:[%s4 + $0x1b0] sm:$0xff]
    %v1538 = vld [vmem:[%s4 + $0x1b8] sm:$0xf]
    %v1539 = vld [vmem:[%s4 + $0x1bc] sm:$0xff]
    %v1540 = vld [vmem:[%s4 + $0x1c4] sm:$0xf]
    %v1541 = vld [vmem:[%s4 + $0x1c8] sm:$0xff]
    %v1542 = vld [vmem:[%s4 + $0x1d0] sm:$0xf]
    %v1543 = vld [vmem:[%s4 + $0x1d4] sm:$0xff]
    %v1544 = vld [vmem:[%s4 + $0x1dc] sm:$0xf]
    %v1545 = vld [vmem:[%s4 + $0x1e0] sm:$0xff]
    %v1546 = vld [vmem:[%s4 + $0x1e8] sm:$0xf]
    %v1547 = vld [vmem:[%s4 + $0x1ec] sm:$0xff]
    %v1548 = vld [vmem:[%s4 + $0x1f4] sm:$0xf]
    %v1549 = vld [vmem:[%s4 + $0x1f8] sm:$0xff]
    %v1550 = vld [vmem:[%s4 + $0x200] sm:$0xf]
    %v1551 = vld [vmem:[%s4 + $0x204] sm:$0xff]
    %v1552 = vld [vmem:[%s4 + $0x20c] sm:$0xf]
    %v1553 = vld [vmem:[%s4 + $0x210] sm:$0xff]
    %v1554 = vld [vmem:[%s4 + $0x218] sm:$0xf]
    %v1555 = vld [vmem:[%s4 + $0x21c] sm:$0xff]
    %v1556 = vld [vmem:[%s4 + $0x224] sm:$0xf]
    %v1557 = vld [vmem:[%s4 + $0x228] sm:$0xff]
    %v1558 = vld [vmem:[%s4 + $0x230] sm:$0xf]
    %v1559 = vld [vmem:[%s4 + $0x234] sm:$0xff]
    %v1560 = vld [vmem:[%s4 + $0x23c] sm:$0xf]
    %v1561 = vld [vmem:[%s4 + $0x240] sm:$0xff]
    %v1562 = vld [vmem:[%s4 + $0x248] sm:$0xf]
    %v1563 = vld [vmem:[%s4 + $0x24c] sm:$0xff]
    %v1564 = vld [vmem:[%s4 + $0x254] sm:$0xf]
    %v1565 = vld [vmem:[%s4 + $0x258] sm:$0xff]
    %v1566 = vld [vmem:[%s4 + $0x260] sm:$0xf]
    %v1567 = vld [vmem:[%s4 + $0x264] sm:$0xff]
    %v1568 = vld [vmem:[%s4 + $0x26c] sm:$0xf]
    %v1569 = vld [vmem:[%s4 + $0x270] sm:$0xff]
    %v1570 = vld [vmem:[%s4 + $0x278] sm:$0xf]
    %v1571 = vld [vmem:[%s4 + $0x27c] sm:$0xff]
    %v1572 = vld [vmem:[%s4 + $0x284] sm:$0xf]
    %v1573 = vld [vmem:[%s4 + $0x288] sm:$0xff]
    %v1574 = vld [vmem:[%s4 + $0x290] sm:$0xf]
    %v1575 = vld [vmem:[%s4 + $0x294] sm:$0xff]
    %v1576 = vld [vmem:[%s4 + $0x29c] sm:$0xf]
    %v1577 = vld [vmem:[%s4 + $0x2a0] sm:$0xff]
    %v1578 = vld [vmem:[%s4 + $0x2a8] sm:$0xf]
    %v1579 = vld [vmem:[%s4 + $0x2ac] sm:$0xff]
    %v1580 = vld [vmem:[%s4 + $0x2b4] sm:$0xf]
    %v1581 = vld [vmem:[%s4 + $0x2b8] sm:$0xff]
    %v1582 = vld [vmem:[%s4 + $0x2c0] sm:$0xf]
    %v1583 = vld [vmem:[%s4 + $0x2c4] sm:$0xff]
    %v1584 = vld [vmem:[%s4 + $0x2cc] sm:$0xf]
    %v1585 = vld [vmem:[%s4 + $0x2d0] sm:$0xff]
    %v1586 = vld [vmem:[%s4 + $0x2d8] sm:$0xf]
    %v1587 = vld [vmem:[%s4 + $0x2dc] sm:$0xff]
    %v1588 = vld [vmem:[%s4 + $0x2e4] sm:$0xf]
    %v1589 = vld [vmem:[%s4 + $0x2e8] sm:$0xff]
    %v1590 = vld [vmem:[%s4 + $0x2f0] sm:$0xf]
    %v1591 = vld [vmem:[%s4 + $0x2f4] sm:$0xff]
    %v1592 = vld [vmem:[%s4 + $0x2fc] sm:$0xf]
    %v1593 = vld [vmem:[%s4 + $0x300] sm:$0xff]
    %v1594 = vld [vmem:[%s4 + $0x308] sm:$0xf]
    %v1595 = vld [vmem:[%s4 + $0x30c] sm:$0xff]
    %v1596 = vld [vmem:[%s4 + $0x314] sm:$0xf]
    %v1597 = vld [vmem:[%s4 + $0x318] sm:$0xff]
    %v1598 = vld [vmem:[%s4 + $0x320] sm:$0xf]
    %v1599 = vld [vmem:[%s4 + $0x324] sm:$0xff]
    %v1600 = vld [vmem:[%s4 + $0x32c] sm:$0xf]
    %v1601 = vld [vmem:[%s4 + $0x330] sm:$0xff]
    %v1602 = vld [vmem:[%s4 + $0x338] sm:$0xf]
    %v1603 = vld [vmem:[%s4 + $0x33c] sm:$0xff]
    %v1604 = vld [vmem:[%s4 + $0x344] sm:$0xf]
    %v1605 = vld [vmem:[%s4 + $0x348] sm:$0xff]
    %v1606 = vld [vmem:[%s4 + $0x350] sm:$0xf]
    %v1607 = vld [vmem:[%s4 + $0x354] sm:$0xff]
    %v1608 = vld [vmem:[%s4 + $0x35c] sm:$0xf]
    %v1609 = vld [vmem:[%s4 + $0x360] sm:$0xff]
    %v1610 = vld [vmem:[%s4 + $0x368] sm:$0xf]
    %v1611 = vld [vmem:[%s4 + $0x36c] sm:$0xff]
    %v1612 = vld [vmem:[%s4 + $0x374] sm:$0xf]
    %v1613 = vld [vmem:[%s4 + $0x378] sm:$0xff]
    %v1614 = vld [vmem:[%s4 + $0x380] sm:$0xf]
    %v1615 = vld [vmem:[%s4 + $0x384] sm:$0xff]
    %v1616 = vld [vmem:[%s4 + $0x38c] sm:$0xf]
    %v1617 = vld [vmem:[%s4 + $0x390] sm:$0xff]
    %v1618 = vld [vmem:[%s4 + $0x398] sm:$0xf]
    %v1619 = vld [vmem:[%s4 + $0x39c] sm:$0xff]
    %v1620 = vld [vmem:[%s4 + $0x3a4] sm:$0xf]
    %v1621 = vld [vmem:[%s4 + $0x3a8] sm:$0xff]
    %v1622 = vld [vmem:[%s4 + $0x3b0] sm:$0xf]
    %v1623 = vld [vmem:[%s4 + $0x3b4] sm:$0xff]
    %v1624 = vld [vmem:[%s4 + $0x3bc] sm:$0xf]
    %v1625 = vld [vmem:[%s4 + $0x3c0] sm:$0xff]
    %v1626 = vld [vmem:[%s4 + $0x3c8] sm:$0xf]
    %v1627 = vld [vmem:[%s4 + $0x3cc] sm:$0xff]
    %v1628 = vld [vmem:[%s4 + $0x3d4] sm:$0xf]
    %v1629 = vld [vmem:[%s4 + $0x3d8] sm:$0xff]
    %v1630 = vld [vmem:[%s4 + $0x3e0] sm:$0xf]
    %v1631 = vld [vmem:[%s4 + $0x3e4] sm:$0xff]
    %v1632 = vld [vmem:[%s4 + $0x3ec] sm:$0xf]
    %v1633 = vld [vmem:[%s4 + $0x3f0] sm:$0xff]
    %v1634 = vld [vmem:[%s4 + $0x3f8] sm:$0xf]
    %v1635 = vld [vmem:[%s4 + $0x3fc] sm:$0xff]
    %v1636 = vld [vmem:[%s4 + $0x404] sm:$0xf]
    %v1637 = vld [vmem:[%s4 + $0x408] sm:$0xff]
    %v1638 = vld [vmem:[%s4 + $0x410] sm:$0xf]
    %v1639 = vld [vmem:[%s4 + $0x414] sm:$0xff]
    %v1640 = vld [vmem:[%s4 + $0x41c] sm:$0xf]
    %v1641 = vld [vmem:[%s4 + $0x420] sm:$0xff]
    %v1642 = vld [vmem:[%s4 + $0x428] sm:$0xf]
    %v1643 = vld [vmem:[%s4 + $0x42c] sm:$0xff]
    %v1644 = vld [vmem:[%s4 + $0x434] sm:$0xf]
    %v1645 = vld [vmem:[%s4 + $0x438] sm:$0xff]
    %v1646 = vld [vmem:[%s4 + $0x440] sm:$0xf]
    %v1647 = vld [vmem:[%s4 + $0x444] sm:$0xff]
    %v1648 = vld [vmem:[%s4 + $0x44c] sm:$0xf]
    %v1649 = vld [vmem:[%s4 + $0x450] sm:$0xff]
    %v1650 = vld [vmem:[%s4 + $0x458] sm:$0xf]
    %v1651 = vld [vmem:[%s4 + $0x45c] sm:$0xff]
    %v1652 = vld [vmem:[%s4 + $0x464] sm:$0xf]
    %v1653 = vld [vmem:[%s4 + $0x468] sm:$0xff]
    %v1654 = vld [vmem:[%s4 + $0x470] sm:$0xf]
    %v1655 = vld [vmem:[%s4 + $0x474] sm:$0xff]
    %v1656 = vld [vmem:[%s4 + $0x47c] sm:$0xf]
    %v1657 = vld [vmem:[%s5] sm:$0x7]
    %v1659 = vlaneseq
    %v1660 = vshrl.u32 %v1659, 7
    %v1661 = vsub.s32 0, %v1660
    %v1662 = vrot.slane %v1657, %v1661
    %v1663 = vlaneseq
    %v1664 = vshrl.u32 %v1663, 7
    %v1665 = vsub.s32 1, %v1664
    %v1666 = vrot.slane %v1657, %v1665
    %v1667 = vlaneseq
    %v1668 = vshrl.u32 %v1667, 7
    %v1669 = vsub.s32 2, %v1668
    %v1670 = vrot.slane %v1657, %v1669
    %v1866 = vunpack.c.l.b16 %v1465
    %v1867 = vunpack.c.h.b16 %v1465
    %v1868 = vunpack.c.l.b16 %v1466
    %v1869 = vunpack.c.l.b16 %v1467
    %v1870 = vunpack.c.h.b16 %v1467
    %v1871 = vunpack.c.l.b16 %v1468
    %v1872 = vunpack.c.l.b16 %v1469
    %v1873 = vunpack.c.h.b16 %v1469
    %v1874 = vunpack.c.l.b16 %v1470
    %v1875 = vunpack.c.l.b16 %v1471
    %v1876 = vunpack.c.h.b16 %v1471
    %v1877 = vunpack.c.l.b16 %v1472
    %v1878 = vunpack.c.l.b16 %v1473
    %v1879 = vunpack.c.h.b16 %v1473
    %v1880 = vunpack.c.l.b16 %v1474
    %v1881 = vunpack.c.l.b16 %v1475
    %v1882 = vunpack.c.h.b16 %v1475
    %v1883 = vunpack.c.l.b16 %v1476
    %v1884 = vunpack.c.l.b16 %v1477
    %v1885 = vunpack.c.h.b16 %v1477
    %v1886 = vunpack.c.l.b16 %v1478
    %v1887 = vunpack.c.l.b16 %v1479
    %v1888 = vunpack.c.h.b16 %v1479
    %v1889 = vunpack.c.l.b16 %v1480
    %v1890 = vunpack.c.l.b16 %v1481
    %v1891 = vunpack.c.h.b16 %v1481
    %v1892 = vunpack.c.l.b16 %v1482
    %v1893 = vunpack.c.l.b16 %v1483
    %v1894 = vunpack.c.h.b16 %v1483
    %v1895 = vunpack.c.l.b16 %v1484
    %v1896 = vunpack.c.l.b16 %v1485
    %v1897 = vunpack.c.h.b16 %v1485
    %v1898 = vunpack.c.l.b16 %v1486
    %v1899 = vunpack.c.l.b16 %v1487
    %v1900 = vunpack.c.h.b16 %v1487
    %v1901 = vunpack.c.l.b16 %v1488
    %v1902 = vunpack.c.l.b16 %v1489
    %v1903 = vunpack.c.h.b16 %v1489
    %v1904 = vunpack.c.l.b16 %v1490
    %v1905 = vunpack.c.l.b16 %v1491
    %v1906 = vunpack.c.h.b16 %v1491
    %v1907 = vunpack.c.l.b16 %v1492
    %v1908 = vunpack.c.l.b16 %v1493
    %v1909 = vunpack.c.h.b16 %v1493
    %v1910 = vunpack.c.l.b16 %v1494
    %v1911 = vunpack.c.l.b16 %v1495
    %v1912 = vunpack.c.h.b16 %v1495
    %v1913 = vunpack.c.l.b16 %v1496
    %v1914 = vunpack.c.l.b16 %v1497
    %v1915 = vunpack.c.h.b16 %v1497
    %v1916 = vunpack.c.l.b16 %v1498
    %v1917 = vunpack.c.l.b16 %v1499
    %v1918 = vunpack.c.h.b16 %v1499
    %v1919 = vunpack.c.l.b16 %v1500
    %v1920 = vunpack.c.l.b16 %v1501
    %v1921 = vunpack.c.h.b16 %v1501
    %v1922 = vunpack.c.l.b16 %v1502
    %v1923 = vunpack.c.l.b16 %v1503
    %v1924 = vunpack.c.h.b16 %v1503
    %v1925 = vunpack.c.l.b16 %v1504
    %v1926 = vunpack.c.l.b16 %v1505
    %v1927 = vunpack.c.h.b16 %v1505
    %v1928 = vunpack.c.l.b16 %v1506
    %v1929 = vunpack.c.l.b16 %v1507
    %v1930 = vunpack.c.h.b16 %v1507
    %v1931 = vunpack.c.l.b16 %v1508
    %v1932 = vunpack.c.l.b16 %v1509
    %v1933 = vunpack.c.h.b16 %v1509
    %v1934 = vunpack.c.l.b16 %v1510
    %v1935 = vunpack.c.l.b16 %v1511
    %v1936 = vunpack.c.h.b16 %v1511
    %v1937 = vunpack.c.l.b16 %v1512
    %v1938 = vunpack.c.l.b16 %v1513
    %v1939 = vunpack.c.h.b16 %v1513
    %v1940 = vunpack.c.l.b16 %v1514
    %v1941 = vunpack.c.l.b16 %v1515
    %v1942 = vunpack.c.h.b16 %v1515
    %v1943 = vunpack.c.l.b16 %v1516
    %v1944 = vunpack.c.l.b16 %v1517
    %v1945 = vunpack.c.h.b16 %v1517
    %v1946 = vunpack.c.l.b16 %v1518
    %v1947 = vunpack.c.l.b16 %v1519
    %v1948 = vunpack.c.h.b16 %v1519
    %v1949 = vunpack.c.l.b16 %v1520
    %v1950 = vunpack.c.l.b16 %v1521
    %v1951 = vunpack.c.h.b16 %v1521
    %v1952 = vunpack.c.l.b16 %v1522
    %v1953 = vunpack.c.l.b16 %v1523
    %v1954 = vunpack.c.h.b16 %v1523
    %v1955 = vunpack.c.l.b16 %v1524
    %v1956 = vunpack.c.l.b16 %v1525
    %v1957 = vunpack.c.h.b16 %v1525
    %v1958 = vunpack.c.l.b16 %v1526
    %v1959 = vunpack.c.l.b16 %v1527
    %v1960 = vunpack.c.h.b16 %v1527
    %v1961 = vunpack.c.l.b16 %v1528
    %v1962 = vunpack.c.l.b16 %v1529
    %v1963 = vunpack.c.h.b16 %v1529
    %v1964 = vunpack.c.l.b16 %v1530
    %v1965 = vunpack.c.l.b16 %v1531
    %v1966 = vunpack.c.h.b16 %v1531
    %v1967 = vunpack.c.l.b16 %v1532
    %v1968 = vunpack.c.l.b16 %v1533
    %v1969 = vunpack.c.h.b16 %v1533
    %v1970 = vunpack.c.l.b16 %v1534
    %v1971 = vunpack.c.l.b16 %v1535
    %v1972 = vunpack.c.h.b16 %v1535
    %v1973 = vunpack.c.l.b16 %v1536
    %v1974 = vunpack.c.l.b16 %v1537
    %v1975 = vunpack.c.h.b16 %v1537
    %v1976 = vunpack.c.l.b16 %v1538
    %v1977 = vunpack.c.l.b16 %v1539
    %v1978 = vunpack.c.h.b16 %v1539
    %v1979 = vunpack.c.l.b16 %v1540
    %v1980 = vunpack.c.l.b16 %v1541
    %v1981 = vunpack.c.h.b16 %v1541
    %v1982 = vunpack.c.l.b16 %v1542
    %v1983 = vunpack.c.l.b16 %v1543
    %v1984 = vunpack.c.h.b16 %v1543
    %v1985 = vunpack.c.l.b16 %v1544
    %v1986 = vunpack.c.l.b16 %v1545
    %v1987 = vunpack.c.h.b16 %v1545
    %v1988 = vunpack.c.l.b16 %v1546
    %v1989 = vunpack.c.l.b16 %v1547
    %v1990 = vunpack.c.h.b16 %v1547
    %v1991 = vunpack.c.l.b16 %v1548
    %v1992 = vunpack.c.l.b16 %v1549
    %v1993 = vunpack.c.h.b16 %v1549
    %v1994 = vunpack.c.l.b16 %v1550
    %v1995 = vunpack.c.l.b16 %v1551
    %v1996 = vunpack.c.h.b16 %v1551
    %v1997 = vunpack.c.l.b16 %v1552
    %v1998 = vunpack.c.l.b16 %v1553
    %v1999 = vunpack.c.h.b16 %v1553
    %v2000 = vunpack.c.l.b16 %v1554
    %v2001 = vunpack.c.l.b16 %v1555
    %v2002 = vunpack.c.h.b16 %v1555
    %v2003 = vunpack.c.l.b16 %v1556
    %v2004 = vunpack.c.l.b16 %v1557
    %v2005 = vunpack.c.h.b16 %v1557
    %v2006 = vunpack.c.l.b16 %v1558
    %v2007 = vunpack.c.l.b16 %v1559
    %v2008 = vunpack.c.h.b16 %v1559
    %v2009 = vunpack.c.l.b16 %v1560
    %v2010 = vunpack.c.l.b16 %v1561
    %v2011 = vunpack.c.h.b16 %v1561
    %v2012 = vunpack.c.l.b16 %v1562
    %v2013 = vunpack.c.l.b16 %v1563
    %v2014 = vunpack.c.h.b16 %v1563
    %v2015 = vunpack.c.l.b16 %v1564
    %v2016 = vunpack.c.l.b16 %v1565
    %v2017 = vunpack.c.h.b16 %v1565
    %v2018 = vunpack.c.l.b16 %v1566
    %v2019 = vunpack.c.l.b16 %v1567
    %v2020 = vunpack.c.h.b16 %v1567
    %v2021 = vunpack.c.l.b16 %v1568
    %v2022 = vunpack.c.l.b16 %v1569
    %v2023 = vunpack.c.h.b16 %v1569
    %v2024 = vunpack.c.l.b16 %v1570
    %v2025 = vunpack.c.l.b16 %v1571
    %v2026 = vunpack.c.h.b16 %v1571
    %v2027 = vunpack.c.l.b16 %v1572
    %v2028 = vunpack.c.l.b16 %v1573
    %v2029 = vunpack.c.h.b16 %v1573
    %v2030 = vunpack.c.l.b16 %v1574
    %v2031 = vunpack.c.l.b16 %v1575
    %v2032 = vunpack.c.h.b16 %v1575
    %v2033 = vunpack.c.l.b16 %v1576
    %v2034 = vunpack.c.l.b16 %v1577
    %v2035 = vunpack.c.h.b16 %v1577
    %v2036 = vunpack.c.l.b16 %v1578
    %v2037 = vunpack.c.l.b16 %v1579
    %v2038 = vunpack.c.h.b16 %v1579
    %v2039 = vunpack.c.l.b16 %v1580
    %v2040 = vunpack.c.l.b16 %v1581
    %v2041 = vunpack.c.h.b16 %v1581
    %v2042 = vunpack.c.l.b16 %v1582
    %v2043 = vunpack.c.l.b16 %v1583
    %v2044 = vunpack.c.h.b16 %v1583
    %v2045 = vunpack.c.l.b16 %v1584
    %v2046 = vunpack.c.l.b16 %v1585
    %v2047 = vunpack.c.h.b16 %v1585
    %v2048 = vunpack.c.l.b16 %v1586
    %v2049 = vunpack.c.l.b16 %v1587
    %v2050 = vunpack.c.h.b16 %v1587
    %v2051 = vunpack.c.l.b16 %v1588
    %v2052 = vunpack.c.l.b16 %v1589
    %v2053 = vunpack.c.h.b16 %v1589
    %v2054 = vunpack.c.l.b16 %v1590
    %v2055 = vunpack.c.l.b16 %v1591
    %v2056 = vunpack.c.h.b16 %v1591
    %v2057 = vunpack.c.l.b16 %v1592
    %v2058 = vunpack.c.l.b16 %v1593
    %v2059 = vunpack.c.h.b16 %v1593
    %v2060 = vunpack.c.l.b16 %v1594
    %v2061 = vunpack.c.l.b16 %v1595
    %v2062 = vunpack.c.h.b16 %v1595
    %v2063 = vunpack.c.l.b16 %v1596
    %v2064 = vunpack.c.l.b16 %v1597
    %v2065 = vunpack.c.h.b16 %v1597
    %v2066 = vunpack.c.l.b16 %v1598
    %v2067 = vunpack.c.l.b16 %v1599
    %v2068 = vunpack.c.h.b16 %v1599
    %v2069 = vunpack.c.l.b16 %v1600
    %v2070 = vunpack.c.l.b16 %v1601
    %v2071 = vunpack.c.h.b16 %v1601
    %v2072 = vunpack.c.l.b16 %v1602
    %v2073 = vunpack.c.l.b16 %v1603
    %v2074 = vunpack.c.h.b16 %v1603
    %v2075 = vunpack.c.l.b16 %v1604
    %v2076 = vunpack.c.l.b16 %v1605
    %v2077 = vunpack.c.h.b16 %v1605
    %v2078 = vunpack.c.l.b16 %v1606
    %v2079 = vunpack.c.l.b16 %v1607
    %v2080 = vunpack.c.h.b16 %v1607
    %v2081 = vunpack.c.l.b16 %v1608
    %v2082 = vunpack.c.l.b16 %v1609
    %v2083 = vunpack.c.h.b16 %v1609
    %v2084 = vunpack.c.l.b16 %v1610
    %v2085 = vunpack.c.l.b16 %v1611
    %v2086 = vunpack.c.h.b16 %v1611
    %v2087 = vunpack.c.l.b16 %v1612
    %v2088 = vunpack.c.l.b16 %v1613
    %v2089 = vunpack.c.h.b16 %v1613
    %v2090 = vunpack.c.l.b16 %v1614
    %v2091 = vunpack.c.l.b16 %v1615
    %v2092 = vunpack.c.h.b16 %v1615
    %v2093 = vunpack.c.l.b16 %v1616
    %v2094 = vunpack.c.l.b16 %v1617
    %v2095 = vunpack.c.h.b16 %v1617
    %v2096 = vunpack.c.l.b16 %v1618
    %v2097 = vunpack.c.l.b16 %v1619
    %v2098 = vunpack.c.h.b16 %v1619
    %v2099 = vunpack.c.l.b16 %v1620
    %v2100 = vunpack.c.l.b16 %v1621
    %v2101 = vunpack.c.h.b16 %v1621
    %v2102 = vunpack.c.l.b16 %v1622
    %v2103 = vunpack.c.l.b16 %v1623
    %v2104 = vunpack.c.h.b16 %v1623
    %v2105 = vunpack.c.l.b16 %v1624
    %v2106 = vunpack.c.l.b16 %v1625
    %v2107 = vunpack.c.h.b16 %v1625
    %v2108 = vunpack.c.l.b16 %v1626
    %v2109 = vunpack.c.l.b16 %v1627
    %v2110 = vunpack.c.h.b16 %v1627
    %v2111 = vunpack.c.l.b16 %v1628
    %v2112 = vunpack.c.l.b16 %v1629
    %v2113 = vunpack.c.h.b16 %v1629
    %v2114 = vunpack.c.l.b16 %v1630
    %v2115 = vunpack.c.l.b16 %v1631
    %v2116 = vunpack.c.h.b16 %v1631
    %v2117 = vunpack.c.l.b16 %v1632
    %v2118 = vunpack.c.l.b16 %v1633
    %v2119 = vunpack.c.h.b16 %v1633
    %v2120 = vunpack.c.l.b16 %v1634
    %v2121 = vunpack.c.l.b16 %v1635
    %v2122 = vunpack.c.h.b16 %v1635
    %v2123 = vunpack.c.l.b16 %v1636
    %v2124 = vunpack.c.l.b16 %v1637
    %v2125 = vunpack.c.h.b16 %v1637
    %v2126 = vunpack.c.l.b16 %v1638
    %v2127 = vunpack.c.l.b16 %v1639
    %v2128 = vunpack.c.h.b16 %v1639
    %v2129 = vunpack.c.l.b16 %v1640
    %v2130 = vunpack.c.l.b16 %v1641
    %v2131 = vunpack.c.h.b16 %v1641
    %v2132 = vunpack.c.l.b16 %v1642
    %v2133 = vunpack.c.l.b16 %v1643
    %v2134 = vunpack.c.h.b16 %v1643
    %v2135 = vunpack.c.l.b16 %v1644
    %v2136 = vunpack.c.l.b16 %v1645
    %v2137 = vunpack.c.h.b16 %v1645
    %v2138 = vunpack.c.l.b16 %v1646
    %v2139 = vunpack.c.l.b16 %v1647
    %v2140 = vunpack.c.h.b16 %v1647
    %v2141 = vunpack.c.l.b16 %v1648
    %v2142 = vunpack.c.l.b16 %v1649
    %v2143 = vunpack.c.h.b16 %v1649
    %v2144 = vunpack.c.l.b16 %v1650
    %v2145 = vunpack.c.l.b16 %v1651
    %v2146 = vunpack.c.h.b16 %v1651
    %v2147 = vunpack.c.l.b16 %v1652
    %v2148 = vunpack.c.l.b16 %v1653
    %v2149 = vunpack.c.h.b16 %v1653
    %v2150 = vunpack.c.l.b16 %v1654
    %v2151 = vunpack.c.l.b16 %v1655
    %v2152 = vunpack.c.h.b16 %v1655
    %v2153 = vunpack.c.l.b16 %v1656
    %v2154 = vpack.c.b16 %v1869, %v1866
    %v2155 = vpack.c.b16 %v1870, %v1867
    %v2156 = vpack.c.b16 %v1871, %v1868
    %v2157 = vpack.c.b16 %v1875, %v1872
    %v2158 = vpack.c.b16 %v1876, %v1873
    %v2159 = vpack.c.b16 %v1877, %v1874
    %v2160 = vpack.c.b16 %v1881, %v1878
    %v2161 = vpack.c.b16 %v1882, %v1879
    %v2162 = vpack.c.b16 %v1883, %v1880
    %v2163 = vpack.c.b16 %v1887, %v1884
    %v2164 = vpack.c.b16 %v1888, %v1885
    %v2165 = vpack.c.b16 %v1889, %v1886
    %v2166 = vpack.c.b16 %v1893, %v1890
    %v2167 = vpack.c.b16 %v1894, %v1891
    %v2168 = vpack.c.b16 %v1895, %v1892
    %v2169 = vpack.c.b16 %v1899, %v1896
    %v2170 = vpack.c.b16 %v1900, %v1897
    %v2171 = vpack.c.b16 %v1901, %v1898
    %v2172 = vpack.c.b16 %v1905, %v1902
    %v2173 = vpack.c.b16 %v1906, %v1903
    %v2174 = vpack.c.b16 %v1907, %v1904
    %v2175 = vpack.c.b16 %v1911, %v1908
    %v2176 = vpack.c.b16 %v1912, %v1909
    %v2177 = vpack.c.b16 %v1913, %v1910
    %v2178 = vpack.c.b16 %v1917, %v1914
    %v2179 = vpack.c.b16 %v1918, %v1915
    %v2180 = vpack.c.b16 %v1919, %v1916
    %v2181 = vpack.c.b16 %v1923, %v1920
    %v2182 = vpack.c.b16 %v1924, %v1921
    %v2183 = vpack.c.b16 %v1925, %v1922
    %v2184 = vpack.c.b16 %v1929, %v1926
    %v2185 = vpack.c.b16 %v1930, %v1927
    %v2186 = vpack.c.b16 %v1931, %v1928
    %v2187 = vpack.c.b16 %v1935, %v1932
    %v2188 = vpack.c.b16 %v1936, %v1933
    %v2189 = vpack.c.b16 %v1937, %v1934
    %v2190 = vpack.c.b16 %v1941, %v1938
    %v2191 = vpack.c.b16 %v1942, %v1939
    %v2192 = vpack.c.b16 %v1943, %v1940
    %v2193 = vpack.c.b16 %v1947, %v1944
    %v2194 = vpack.c.b16 %v1948, %v1945
    %v2195 = vpack.c.b16 %v1949, %v1946
    %v2196 = vpack.c.b16 %v1953, %v1950
    %v2197 = vpack.c.b16 %v1954, %v1951
    %v2198 = vpack.c.b16 %v1955, %v1952
    %v2199 = vpack.c.b16 %v1959, %v1956
    %v2200 = vpack.c.b16 %v1960, %v1957
    %v2201 = vpack.c.b16 %v1961, %v1958
    %v2202 = vpack.c.b16 %v1965, %v1962
    %v2203 = vpack.c.b16 %v1966, %v1963
    %v2204 = vpack.c.b16 %v1967, %v1964
    %v2205 = vpack.c.b16 %v1971, %v1968
    %v2206 = vpack.c.b16 %v1972, %v1969
    %v2207 = vpack.c.b16 %v1973, %v1970
    %v2208 = vpack.c.b16 %v1977, %v1974
    %v2209 = vpack.c.b16 %v1978, %v1975
    %v2210 = vpack.c.b16 %v1979, %v1976
    %v2211 = vpack.c.b16 %v1983, %v1980
    %v2212 = vpack.c.b16 %v1984, %v1981
    %v2213 = vpack.c.b16 %v1985, %v1982
    %v2214 = vpack.c.b16 %v1989, %v1986
    %v2215 = vpack.c.b16 %v1990, %v1987
    %v2216 = vpack.c.b16 %v1991, %v1988
    %v2217 = vpack.c.b16 %v1995, %v1992
    %v2218 = vpack.c.b16 %v1996, %v1993
    %v2219 = vpack.c.b16 %v1997, %v1994
    %v2220 = vpack.c.b16 %v2001, %v1998
    %v2221 = vpack.c.b16 %v2002, %v1999
    %v2222 = vpack.c.b16 %v2003, %v2000
    %v2223 = vpack.c.b16 %v2007, %v2004
    %v2224 = vpack.c.b16 %v2008, %v2005
    %v2225 = vpack.c.b16 %v2009, %v2006
    %v2226 = vpack.c.b16 %v2013, %v2010
    %v2227 = vpack.c.b16 %v2014, %v2011
    %v2228 = vpack.c.b16 %v2015, %v2012
    %v2229 = vpack.c.b16 %v2019, %v2016
    %v2230 = vpack.c.b16 %v2020, %v2017
    %v2231 = vpack.c.b16 %v2021, %v2018
    %v2232 = vpack.c.b16 %v2025, %v2022
    %v2233 = vpack.c.b16 %v2026, %v2023
    %v2234 = vpack.c.b16 %v2027, %v2024
    %v2235 = vpack.c.b16 %v2031, %v2028
    %v2236 = vpack.c.b16 %v2032, %v2029
    %v2237 = vpack.c.b16 %v2033, %v2030
    %v2238 = vpack.c.b16 %v2037, %v2034
    %v2239 = vpack.c.b16 %v2038, %v2035
    %v2240 = vpack.c.b16 %v2039, %v2036
    %v2241 = vpack.c.b16 %v2043, %v2040
    %v2242 = vpack.c.b16 %v2044, %v2041
    %v2243 = vpack.c.b16 %v2045, %v2042
    %v2244 = vpack.c.b16 %v2049, %v2046
    %v2245 = vpack.c.b16 %v2050, %v2047
    %v2246 = vpack.c.b16 %v2051, %v2048
    %v2247 = vpack.c.b16 %v2055, %v2052
    %v2248 = vpack.c.b16 %v2056, %v2053
    %v2249 = vpack.c.b16 %v2057, %v2054
    %v2250 = vpack.c.b16 %v2061, %v2058
    %v2251 = vpack.c.b16 %v2062, %v2059
    %v2252 = vpack.c.b16 %v2063, %v2060
    %v2253 = vpack.c.b16 %v2067, %v2064
    %v2254 = vpack.c.b16 %v2068, %v2065
    %v2255 = vpack.c.b16 %v2069, %v2066
    %v2256 = vpack.c.b16 %v2073, %v2070
    %v2257 = vpack.c.b16 %v2074, %v2071
    %v2258 = vpack.c.b16 %v2075, %v2072
    %v2259 = vpack.c.b16 %v2079, %v2076
    %v2260 = vpack.c.b16 %v2080, %v2077
    %v2261 = vpack.c.b16 %v2081, %v2078
    %v2262 = vpack.c.b16 %v2085, %v2082
    %v2263 = vpack.c.b16 %v2086, %v2083
    %v2264 = vpack.c.b16 %v2087, %v2084
    %v2265 = vpack.c.b16 %v2091, %v2088
    %v2266 = vpack.c.b16 %v2092, %v2089
    %v2267 = vpack.c.b16 %v2093, %v2090
    %v2268 = vpack.c.b16 %v2097, %v2094
    %v2269 = vpack.c.b16 %v2098, %v2095
    %v2270 = vpack.c.b16 %v2099, %v2096
    %v2271 = vpack.c.b16 %v2103, %v2100
    %v2272 = vpack.c.b16 %v2104, %v2101
    %v2273 = vpack.c.b16 %v2105, %v2102
    %v2274 = vpack.c.b16 %v2109, %v2106
    %v2275 = vpack.c.b16 %v2110, %v2107
    %v2276 = vpack.c.b16 %v2111, %v2108
    %v2277 = vpack.c.b16 %v2115, %v2112
    %v2278 = vpack.c.b16 %v2116, %v2113
    %v2279 = vpack.c.b16 %v2117, %v2114
    %v2280 = vpack.c.b16 %v2121, %v2118
    %v2281 = vpack.c.b16 %v2122, %v2119
    %v2282 = vpack.c.b16 %v2123, %v2120
    %v2283 = vpack.c.b16 %v2127, %v2124
    %v2284 = vpack.c.b16 %v2128, %v2125
    %v2285 = vpack.c.b16 %v2129, %v2126
    %v2286 = vpack.c.b16 %v2133, %v2130
    %v2287 = vpack.c.b16 %v2134, %v2131
    %v2288 = vpack.c.b16 %v2135, %v2132
    %v2289 = vpack.c.b16 %v2139, %v2136
    %v2290 = vpack.c.b16 %v2140, %v2137
    %v2291 = vpack.c.b16 %v2141, %v2138
    %v2292 = vpack.c.b16 %v2145, %v2142
    %v2293 = vpack.c.b16 %v2146, %v2143
    %v2294 = vpack.c.b16 %v2147, %v2144
    %v2295 = vpack.c.b16 %v2151, %v2148
    %v2296 = vpack.c.b16 %v2152, %v2149
    %v2297 = vpack.c.b16 %v2153, %v2150
    %2442 = vmatprep.subr.bf16.mxu0 %v2176
    %2443 = vmatpush1.bf16.msra.mxu0 %v2175
    %2444 = vmatprep.subr.bf16.mxu0 %v2173
    %2445 = vmatpush1.bf16.msra.mxu0 %v2172
    %2446 = vmatprep.subr.bf16.mxu0 %v2170
    %2447 = vmatpush1.bf16.msra.mxu0 %v2169
    %2448 = vmatprep.subr.bf16.mxu0 %v2167
    %2449 = vmatpush1.bf16.msra.mxu0 %v2166
    %2450 = vmatprep.subr.bf16.mxu0 %v2164
    %2451 = vmatpush1.bf16.msra.mxu0 %v2163
    %2452 = vmatprep.subr.bf16.mxu0 %v2161
    %2453 = vmatpush1.bf16.msra.mxu0 %v2160
    %2454 = vmatprep.subr.bf16.mxu0 %v2158
    %2455 = vmatpush1.bf16.msra.mxu0 %v2157
    %2456 = vmatprep.subr.bf16.mxu0 %v2155
    %2457 = vmatpush1.bf16.msra.mxu0 %v2154
    %2458 = vmatprep.subr.bf16.mxu0 %v2200
    %2459 = vmatpush2.bf16.msra.mxu0 %v2199
    %2460 = vmatprep.subr.bf16.mxu0 %v2197
    %2461 = vmatpush2.bf16.msra.mxu0 %v2196
    %2462 = vmatprep.subr.bf16.mxu0 %v2194
    %2463 = vmatpush2.bf16.msra.mxu0 %v2193
    %2464 = vmatprep.subr.bf16.mxu0 %v2191
    %2465 = vmatpush2.bf16.msra.mxu0 %v2190
    %2466 = vmatprep.subr.bf16.mxu0 %v2188
    %2467 = vmatpush2.bf16.msra.mxu0 %v2187
    %2468 = vmatprep.subr.bf16.mxu0 %v2185
    %2469 = vmatpush2.bf16.msra.mxu0 %v2184
    %2470 = vmatprep.subr.bf16.mxu0 %v2182
    %2471 = vmatpush2.bf16.msra.mxu0 %v2181
    %2472 = vmatprep.subr.bf16.mxu0 %v2179
    %2473 = vmatpush2.bf16.msra.mxu0 %v2178
    %2474 = vmatprep.mubr.bf16.mxu0 %v1463
    %2475 = vmatmul.mubr.bf16.gmra.mxu0 %v1462
    %v2476 = vpop.f32.mrf.mxu0
    %v2477 = vadd.f32 %v1662, %v2476
    %v2478 = vpop.f32.mrf.mxu0
    %v2479 = vadd.f32 %v1666, %v2478
    %v2480 = vpop.f32.mrf.mxu0
    %v2481 = vpop.f32.mrf.mxu0
    %2482 = vdwg.mxu0
    %2483 = vmatprep.subr.bf16.mxu0 %v2224
    %2484 = vmatpush1.bf16.msra.mxu0 %v2223
    %2485 = vmatprep.subr.bf16.mxu0 %v2221
    %2486 = vmatpush1.bf16.msra.mxu0 %v2220
    %2487 = vmatprep.subr.bf16.mxu0 %v2218
    %2488 = vmatpush1.bf16.msra.mxu0 %v2217
    %2489 = vmatprep.subr.bf16.mxu0 %v2215
    %2490 = vmatpush1.bf16.msra.mxu0 %v2214
    %2491 = vmatprep.subr.bf16.mxu0 %v2212
    %2492 = vmatpush1.bf16.msra.mxu0 %v2211
    %2493 = vmatprep.subr.bf16.mxu0 %v2209
    %2494 = vmatpush1.bf16.msra.mxu0 %v2208
    %2495 = vmatprep.subr.bf16.mxu0 %v2206
    %2496 = vmatpush1.bf16.msra.mxu0 %v2205
    %2497 = vmatprep.subr.bf16.mxu0 %v2203
    %2498 = vmatpush1.bf16.msra.mxu0 %v2202
    %2499 = vmatprep.subr.bf16.mxu0 %v2248
    %2500 = vmatpush2.bf16.msra.mxu0 %v2247
    %2501 = vmatprep.subr.bf16.mxu0 %v2245
    %2502 = vmatpush2.bf16.msra.mxu0 %v2244
    %2503 = vmatprep.subr.bf16.mxu0 %v2242
    %2504 = vmatpush2.bf16.msra.mxu0 %v2241
    %2505 = vmatprep.subr.bf16.mxu0 %v2239
    %2506 = vmatpush2.bf16.msra.mxu0 %v2238
    %2507 = vmatprep.subr.bf16.mxu0 %v2236
    %2508 = vmatpush2.bf16.msra.mxu0 %v2235
    %2509 = vmatprep.subr.bf16.mxu0 %v2233
    %2510 = vmatpush2.bf16.msra.mxu0 %v2232
    %2511 = vmatprep.subr.bf16.mxu0 %v2230
    %2512 = vmatpush2.bf16.msra.mxu0 %v2229
    %2513 = vmatprep.subr.bf16.mxu0 %v2227
    %2514 = vmatpush2.bf16.msra.mxu0 %v2226
    %2515 = vmatprep.mubr.bf16.mxu0 %v1369
    %2516 = vmatmul.mubr.bf16.gmra.mxu0 %v1464
    %v2517 = vpop.f32.mrf.mxu0
    %v2518 = vadd.f32 %v2477, %v2517
    %v2519 = vpop.f32.mrf.mxu0
    %v2520 = vadd.f32 %v2479, %v2519
    %v2521 = vpop.f32.mrf.mxu0
    %v2522 = vpop.f32.mrf.mxu0
    %2523 = vdwg.mxu0
    %2524 = vmatprep.subr.bf16.mxu0 %v2272
    %2525 = vmatpush1.bf16.msra.mxu0 %v2271
    %2526 = vmatprep.subr.bf16.mxu0 %v2269
    %2527 = vmatpush1.bf16.msra.mxu0 %v2268
    %2528 = vmatprep.subr.bf16.mxu0 %v2266
    %2529 = vmatpush1.bf16.msra.mxu0 %v2265
    %2530 = vmatprep.subr.bf16.mxu0 %v2263
    %2531 = vmatpush1.bf16.msra.mxu0 %v2262
    %2532 = vmatprep.subr.bf16.mxu0 %v2260
    %2533 = vmatpush1.bf16.msra.mxu0 %v2259
    %2534 = vmatprep.subr.bf16.mxu0 %v2257
    %2535 = vmatpush1.bf16.msra.mxu0 %v2256
    %2536 = vmatprep.subr.bf16.mxu0 %v2254
    %2537 = vmatpush1.bf16.msra.mxu0 %v2253
    %2538 = vmatprep.subr.bf16.mxu0 %v2251
    %2539 = vmatpush1.bf16.msra.mxu0 %v2250
    %2540 = vmatprep.subr.bf16.mxu0 %v2296
    %2541 = vmatpush2.bf16.msra.mxu0 %v2295
    %2542 = vmatprep.subr.bf16.mxu0 %v2293
    %2543 = vmatpush2.bf16.msra.mxu0 %v2292
    %2544 = vmatprep.subr.bf16.mxu0 %v2290
    %2545 = vmatpush2.bf16.msra.mxu0 %v2289
    %2546 = vmatprep.subr.bf16.mxu0 %v2287
    %2547 = vmatpush2.bf16.msra.mxu0 %v2286
    %2548 = vmatprep.subr.bf16.mxu0 %v2284
    %2549 = vmatpush2.bf16.msra.mxu0 %v2283
    %2550 = vmatprep.subr.bf16.mxu0 %v2281
    %2551 = vmatpush2.bf16.msra.mxu0 %v2280
    %2552 = vmatprep.subr.bf16.mxu0 %v2278
    %2553 = vmatpush2.bf16.msra.mxu0 %v2277
    %2554 = vmatprep.subr.bf16.mxu0 %v2275
    %2555 = vmatpush2.bf16.msra.mxu0 %v2274
    %2556 = vmatprep.mubr.bf16.mxu0 %v1371
    %2557 = vmatmul.mubr.bf16.gmra.mxu0 %v1370
    %v2558 = vpop.f32.mrf.mxu0
    %v2559 = vadd.f32 %v2518, %v2558
    %v2560 = vpop.f32.mrf.mxu0
    %v2561 = vadd.f32 %v2520, %v2560
    %v2562 = vpop.f32.mrf.mxu0
    %v2563 = vpop.f32.mrf.mxu0
    %2564 = vdwg.mxu0
    %2565 = vmatprep.subr.bf16.mxu0 0
    %2566 = vmatpush1.bf16.msra.mxu0 %v2177
    %2567 = vmatprep.subr.bf16.mxu0 0
    %2568 = vmatpush1.bf16.msra.mxu0 %v2174
    %2569 = vmatprep.subr.bf16.mxu0 0
    %2570 = vmatpush1.bf16.msra.mxu0 %v2171
    %2571 = vmatprep.subr.bf16.mxu0 0
    %2572 = vmatpush1.bf16.msra.mxu0 %v2168
    %2573 = vmatprep.subr.bf16.mxu0 0
    %2574 = vmatpush1.bf16.msra.mxu0 %v2165
    %2575 = vmatprep.subr.bf16.mxu0 0
    %2576 = vmatpush1.bf16.msra.mxu0 %v2162
    %2577 = vmatprep.subr.bf16.mxu0 0
    %2578 = vmatpush1.bf16.msra.mxu0 %v2159
    %2579 = vmatprep.subr.bf16.mxu0 0
    %2580 = vmatpush1.bf16.msra.mxu0 %v2156
    %2581 = vmatprep.subr.bf16.mxu0 0
    %2582 = vmatpush2.bf16.msra.mxu0 %v2201
    %2583 = vmatprep.subr.bf16.mxu0 0
    %2584 = vmatpush2.bf16.msra.mxu0 %v2198
    %2585 = vmatprep.subr.bf16.mxu0 0
    %2586 = vmatpush2.bf16.msra.mxu0 %v2195
    %2587 = vmatprep.subr.bf16.mxu0 0
    %2588 = vmatpush2.bf16.msra.mxu0 %v2192
    %2589 = vmatprep.subr.bf16.mxu0 0
    %2590 = vmatpush2.bf16.msra.mxu0 %v2189
    %2591 = vmatprep.subr.bf16.mxu0 0
    %2592 = vmatpush2.bf16.msra.mxu0 %v2186
    %2593 = vmatprep.subr.bf16.mxu0 0
    %2594 = vmatpush2.bf16.msra.mxu0 %v2183
    %2595 = vmatprep.subr.bf16.mxu0 0
    %2596 = vmatpush2.bf16.msra.mxu0 %v2180
    %2597 = vmatprep.mubr.bf16.mxu0 %v1463
    %2598 = vmatmul.mubr.bf16.gmra.mxu0 %v1462
    %v2599 = vpop.f32.mrf.mxu0
    %v2600 = vadd.f32 %v1670, %v2599
    %v2601 = vpop.f32.mrf.mxu0
    %v2602 = vpop.f32.mrf.mxu0
    %v2603 = vpop.f32.mrf.mxu0
    %2604 = vdwg.mxu0
    %2605 = vmatprep.subr.bf16.mxu0 0
    %2606 = vmatpush1.bf16.msra.mxu0 %v2225
    %2607 = vmatprep.subr.bf16.mxu0 0
    %2608 = vmatpush1.bf16.msra.mxu0 %v2222
    %2609 = vmatprep.subr.bf16.mxu0 0
    %2610 = vmatpush1.bf16.msra.mxu0 %v2219
    %2611 = vmatprep.subr.bf16.mxu0 0
    %2612 = vmatpush1.bf16.msra.mxu0 %v2216
    %2613 = vmatprep.subr.bf16.mxu0 0
    %2614 = vmatpush1.bf16.msra.mxu0 %v2213
    %2615 = vmatprep.subr.bf16.mxu0 0
    %2616 = vmatpush1.bf16.msra.mxu0 %v2210
    %2617 = vmatprep.subr.bf16.mxu0 0
    %2618 = vmatpush1.bf16.msra.mxu0 %v2207
    %2619 = vmatprep.subr.bf16.mxu0 0
    %2620 = vmatpush1.bf16.msra.mxu0 %v2204
    %2621 = vmatprep.subr.bf16.mxu0 0
    %2622 = vmatpush2.bf16.msra.mxu0 %v2249
    %2623 = vmatprep.subr.bf16.mxu0 0
    %2624 = vmatpush2.bf16.msra.mxu0 %v2246
    %2625 = vmatprep.subr.bf16.mxu0 0
    %2626 = vmatpush2.bf16.msra.mxu0 %v2243
    %2627 = vmatprep.subr.bf16.mxu0 0
    %2628 = vmatpush2.bf16.msra.mxu0 %v2240
    %2629 = vmatprep.subr.bf16.mxu0 0
    %2630 = vmatpush2.bf16.msra.mxu0 %v2237
    %2631 = vmatprep.subr.bf16.mxu0 0
    %2632 = vmatpush2.bf16.msra.mxu0 %v2234
    %2633 = vmatprep.subr.bf16.mxu0 0
    %2634 = vmatpush2.bf16.msra.mxu0 %v2231
    %2635 = vmatprep.subr.bf16.mxu0 0
    %2636 = vmatpush2.bf16.msra.mxu0 %v2228
    %2637 = vmatprep.mubr.bf16.mxu0 %v1369
    %2638 = vmatmul.mubr.bf16.gmra.mxu0 %v1464
    %v2639 = vpop.f32.mrf.mxu0
    %v2640 = vadd.f32 %v2600, %v2639
    %v2641 = vpop.f32.mrf.mxu0
    %v2642 = vpop.f32.mrf.mxu0
    %v2643 = vpop.f32.mrf.mxu0
    %2644 = vdwg.mxu0
    %2645 = vmatprep.subr.bf16.mxu0 0
    %2646 = vmatpush1.bf16.msra.mxu0 %v2273
    %2647 = vmatprep.subr.bf16.mxu0 0
    %2648 = vmatpush1.bf16.msra.mxu0 %v2270
    %2649 = vmatprep.subr.bf16.mxu0 0
    %2650 = vmatpush1.bf16.msra.mxu0 %v2267
    %2651 = vmatprep.subr.bf16.mxu0 0
    %2652 = vmatpush1.bf16.msra.mxu0 %v2264
    %2653 = vmatprep.subr.bf16.mxu0 0
    %2654 = vmatpush1.bf16.msra.mxu0 %v2261
    %2655 = vmatprep.subr.bf16.mxu0 0
    %2656 = vmatpush1.bf16.msra.mxu0 %v2258
    %2657 = vmatprep.subr.bf16.mxu0 0
    %2658 = vmatpush1.bf16.msra.mxu0 %v2255
    %2659 = vmatprep.subr.bf16.mxu0 0
    %2660 = vmatpush1.bf16.msra.mxu0 %v2252
    %2661 = vmatprep.subr.bf16.mxu0 0
    %2662 = vmatpush2.bf16.msra.mxu0 %v2297
    %2663 = vmatprep.subr.bf16.mxu0 0
    %2664 = vmatpush2.bf16.msra.mxu0 %v2294
    %2665 = vmatprep.subr.bf16.mxu0 0
    %2666 = vmatpush2.bf16.msra.mxu0 %v2291
    %2667 = vmatprep.subr.bf16.mxu0 0
    %2668 = vmatpush2.bf16.msra.mxu0 %v2288
    %2669 = vmatprep.subr.bf16.mxu0 0
    %2670 = vmatpush2.bf16.msra.mxu0 %v2285
    %2671 = vmatprep.subr.bf16.mxu0 0
    %2672 = vmatpush2.bf16.msra.mxu0 %v2282
    %2673 = vmatprep.subr.bf16.mxu0 0
    %2674 = vmatpush2.bf16.msra.mxu0 %v2279
    %2675 = vmatprep.subr.bf16.mxu0 0
    %2676 = vmatpush2.bf16.msra.mxu0 %v2276
    %2677 = vmatprep.mubr.bf16.mxu0 %v1371
    %2678 = vmatmul.mubr.bf16.gmra.mxu0 %v1370
    %v2679 = vpop.f32.mrf.mxu0
    %v2680 = vadd.f32 %v2640, %v2679
    %v2681 = vpop.f32.mrf.mxu0
    %v2682 = vpop.f32.mrf.mxu0
    %v2683 = vpop.f32.mrf.mxu0
    %2684 = vdwg.mxu0
    %v2685 = vmax.f32 %v2559, 0.0
    %v2686 = vmax.f32 %v2561, 0.0
    %v2687 = vmax.f32 %v2680, 0.0
    %2688 = vst [vmem:[#allocation4] sm:$0xff] %v2685
    %2689 = vst [vmem:[#allocation4 + $0x8] sm:$0xff] %v2686
    %2690 = vst [vmem:[#allocation4 + $0x10] sm:$0xff] %v2687
    %v2691 = vpack.c.bf16 %v2685, %v2685
    %v2692 = vpack.c.bf16 %v2686, %v2686
    %v2693 = vpack.c.bf16 %v2687, %v2687
    %v2694 = vld [vmem:[%s6] sm:$0xf]
    %v2695 = vld [vmem:[%s6 + $0x4] sm:$0xf]
    %v2696 = vld [vmem:[%s6 + $0x8] sm:$0xf]
    %v2697 = vld [vmem:[%s6 + $0xc] sm:$0xf]
    %v2698 = vld [vmem:[%s6 + $0x10] sm:$0xf]
    %v2699 = vld [vmem:[%s6 + $0x14] sm:$0xf]
    %v2700 = vld [vmem:[%s6 + $0x18] sm:$0xf]
    %v2701 = vld [vmem:[%s6 + $0x1c] sm:$0xf]
    %v2702 = vld [vmem:[%s6 + $0x20] sm:$0xf]
    %v2703 = vld [vmem:[%s6 + $0x24] sm:$0xf]
    %v2704 = vld [vmem:[%s6 + $0x28] sm:$0xf]
    %v2705 = vld [vmem:[%s6 + $0x2c] sm:$0xf]
    %v2706 = vld [vmem:[%s6 + $0x30] sm:$0xf]
    %v2707 = vld [vmem:[%s6 + $0x34] sm:$0xf]
    %v2708 = vld [vmem:[%s6 + $0x38] sm:$0xf]
    %v2709 = vld [vmem:[%s6 + $0x3c] sm:$0xf]
    %v2710 = vld [vmem:[%s6 + $0x40] sm:$0xf]
    %v2711 = vld [vmem:[%s6 + $0x44] sm:$0xf]
    %v2712 = vld [vmem:[%s6 + $0x48] sm:$0xf]
    %v2713 = vld [vmem:[%s6 + $0x4c] sm:$0xf]
    %v2714 = vld [vmem:[%s6 + $0x50] sm:$0xf]
    %v2715 = vld [vmem:[%s6 + $0x54] sm:$0xf]
    %v2716 = vld [vmem:[%s6 + $0x58] sm:$0xf]
    %v2717 = vld [vmem:[%s6 + $0x5c] sm:$0xf]
    %v2718 = vld [vmem:[%s6 + $0x60] sm:$0xf]
    %v2719 = vld [vmem:[%s6 + $0x64] sm:$0xf]
    %v2720 = vld [vmem:[%s6 + $0x68] sm:$0xf]
    %v2721 = vld [vmem:[%s6 + $0x6c] sm:$0xf]
    %v2722 = vld [vmem:[%s6 + $0x70] sm:$0xf]
    %v2723 = vld [vmem:[%s6 + $0x74] sm:$0xf]
    %v2724 = vld [vmem:[%s6 + $0x78] sm:$0xf]
    %v2725 = vld [vmem:[%s6 + $0x7c] sm:$0xf]
    %v2726 = vld [vmem:[%s6 + $0x80] sm:$0xf]
    %v2727 = vld [vmem:[%s6 + $0x84] sm:$0xf]
    %v2728 = vld [vmem:[%s6 + $0x88] sm:$0xf]
    %v2729 = vld [vmem:[%s6 + $0x8c] sm:$0xf]
    %v2730 = vld [vmem:[%s6 + $0x90] sm:$0xf]
    %v2731 = vld [vmem:[%s6 + $0x94] sm:$0xf]
    %v2732 = vld [vmem:[%s6 + $0x98] sm:$0xf]
    %v2733 = vld [vmem:[%s6 + $0x9c] sm:$0xf]
    %v2734 = vld [vmem:[%s6 + $0xa0] sm:$0xf]
    %v2735 = vld [vmem:[%s6 + $0xa4] sm:$0xf]
    %v2736 = vld [vmem:[%s6 + $0xa8] sm:$0xf]
    %v2737 = vld [vmem:[%s6 + $0xac] sm:$0xf]
    %v2738 = vld [vmem:[%s6 + $0xb0] sm:$0xf]
    %v2739 = vld [vmem:[%s6 + $0xb4] sm:$0xf]
    %v2740 = vld [vmem:[%s6 + $0xb8] sm:$0xf]
    %v2741 = vld [vmem:[%s6 + $0xbc] sm:$0xf]
    %v2742 = vld [vmem:[%s7] sm:$0x1]
    %v2744 = vlaneseq
    %v2745 = vshrl.u32 %v2744, 7
    %v2746 = vsub.s32 0, %v2745
    %v2747 = vrot.slane %v2742, %v2746
    %v2797 = vunpack.c.l.b16 %v2694
    %v2798 = vunpack.c.l.b16 %v2695
    %v2799 = vunpack.c.l.b16 %v2696
    %v2800 = vunpack.c.l.b16 %v2697
    %v2801 = vunpack.c.l.b16 %v2698
    %v2802 = vunpack.c.l.b16 %v2699
    %v2803 = vunpack.c.l.b16 %v2700
    %v2804 = vunpack.c.l.b16 %v2701
    %v2805 = vunpack.c.l.b16 %v2702
    %v2806 = vunpack.c.l.b16 %v2703
    %v2807 = vunpack.c.l.b16 %v2704
    %v2808 = vunpack.c.l.b16 %v2705
    %v2809 = vunpack.c.l.b16 %v2706
    %v2810 = vunpack.c.l.b16 %v2707
    %v2811 = vunpack.c.l.b16 %v2708
    %v2812 = vunpack.c.l.b16 %v2709
    %v2813 = vunpack.c.l.b16 %v2710
    %v2814 = vunpack.c.l.b16 %v2711
    %v2815 = vunpack.c.l.b16 %v2712
    %v2816 = vunpack.c.l.b16 %v2713
    %v2817 = vunpack.c.l.b16 %v2714
    %v2818 = vunpack.c.l.b16 %v2715
    %v2819 = vunpack.c.l.b16 %v2716
    %v2820 = vunpack.c.l.b16 %v2717
    %v2821 = vunpack.c.l.b16 %v2718
    %v2822 = vunpack.c.l.b16 %v2719
    %v2823 = vunpack.c.l.b16 %v2720
    %v2824 = vunpack.c.l.b16 %v2721
    %v2825 = vunpack.c.l.b16 %v2722
    %v2826 = vunpack.c.l.b16 %v2723
    %v2827 = vunpack.c.l.b16 %v2724
    %v2828 = vunpack.c.l.b16 %v2725
    %v2829 = vunpack.c.l.b16 %v2726
    %v2830 = vunpack.c.l.b16 %v2727
    %v2831 = vunpack.c.l.b16 %v2728
    %v2832 = vunpack.c.l.b16 %v2729
    %v2833 = vunpack.c.l.b16 %v2730
    %v2834 = vunpack.c.l.b16 %v2731
    %v2835 = vunpack.c.l.b16 %v2732
    %v2836 = vunpack.c.l.b16 %v2733
    %v2837 = vunpack.c.l.b16 %v2734
    %v2838 = vunpack.c.l.b16 %v2735
    %v2839 = vunpack.c.l.b16 %v2736
    %v2840 = vunpack.c.l.b16 %v2737
    %v2841 = vunpack.c.l.b16 %v2738
    %v2842 = vunpack.c.l.b16 %v2739
    %v2843 = vunpack.c.l.b16 %v2740
    %v2844 = vunpack.c.l.b16 %v2741
    %v2845 = vpack.c.b16 %v2798, %v2797
    %v2846 = vpack.c.b16 %v2800, %v2799
    %v2847 = vpack.c.b16 %v2802, %v2801
    %v2848 = vpack.c.b16 %v2804, %v2803
    %v2849 = vpack.c.b16 %v2806, %v2805
    %v2850 = vpack.c.b16 %v2808, %v2807
    %v2851 = vpack.c.b16 %v2810, %v2809
    %v2852 = vpack.c.b16 %v2812, %v2811
    %v2853 = vpack.c.b16 %v2814, %v2813
    %v2854 = vpack.c.b16 %v2816, %v2815
    %v2855 = vpack.c.b16 %v2818, %v2817
    %v2856 = vpack.c.b16 %v2820, %v2819
    %v2857 = vpack.c.b16 %v2822, %v2821
    %v2858 = vpack.c.b16 %v2824, %v2823
    %v2859 = vpack.c.b16 %v2826, %v2825
    %v2860 = vpack.c.b16 %v2828, %v2827
    %v2861 = vpack.c.b16 %v2830, %v2829
    %v2862 = vpack.c.b16 %v2832, %v2831
    %v2863 = vpack.c.b16 %v2834, %v2833
    %v2864 = vpack.c.b16 %v2836, %v2835
    %v2865 = vpack.c.b16 %v2838, %v2837
    %v2866 = vpack.c.b16 %v2840, %v2839
    %v2867 = vpack.c.b16 %v2842, %v2841
    %v2868 = vpack.c.b16 %v2844, %v2843
    %2893 = vmatprep.subr.bf16.mxu0 0
    %2894 = vmatpush1.bf16.msra.mxu0 %v2852
    %2895 = vmatprep.subr.bf16.mxu0 0
    %2896 = vmatpush1.bf16.msra.mxu0 %v2851
    %2897 = vmatprep.subr.bf16.mxu0 0
    %2898 = vmatpush1.bf16.msra.mxu0 %v2850
    %2899 = vmatprep.subr.bf16.mxu0 0
    %2900 = vmatpush1.bf16.msra.mxu0 %v2849
    %2901 = vmatprep.subr.bf16.mxu0 0
    %2902 = vmatpush1.bf16.msra.mxu0 %v2848
    %2903 = vmatprep.subr.bf16.mxu0 0
    %2904 = vmatpush1.bf16.msra.mxu0 %v2847
    %2905 = vmatprep.subr.bf16.mxu0 0
    %2906 = vmatpush1.bf16.msra.mxu0 %v2846
    %2907 = vmatprep.subr.bf16.mxu0 0
    %2908 = vmatpush1.bf16.msra.mxu0 %v2845
    %2909 = vmatprep.subr.bf16.mxu0 0
    %2910 = vmatpush2.bf16.msra.mxu0 %v2860
    %2911 = vmatprep.subr.bf16.mxu0 0
    %2912 = vmatpush2.bf16.msra.mxu0 %v2859
    %2913 = vmatprep.subr.bf16.mxu0 0
    %2914 = vmatpush2.bf16.msra.mxu0 %v2858
    %2915 = vmatprep.subr.bf16.mxu0 0
    %2916 = vmatpush2.bf16.msra.mxu0 %v2857
    %2917 = vmatprep.subr.bf16.mxu0 0
    %2918 = vmatpush2.bf16.msra.mxu0 %v2856
    %2919 = vmatprep.subr.bf16.mxu0 0
    %2920 = vmatpush2.bf16.msra.mxu0 %v2855
    %2921 = vmatprep.subr.bf16.mxu0 0
    %2922 = vmatpush2.bf16.msra.mxu0 %v2854
    %2923 = vmatprep.subr.bf16.mxu0 0
    %2924 = vmatpush2.bf16.msra.mxu0 %v2853
    %2925 = vmatprep.mubr.bf16.mxu0 %v2692
    %2926 = vmatmul.mubr.bf16.gmra.mxu0 %v2691
    %v2927 = vpop.f32.mrf.mxu0
    %v2928 = vadd.f32 %v2747, %v2927
    %v2929 = vpop.f32.mrf.mxu0
    %v2930 = vpop.f32.mrf.mxu0
    %v2931 = vpop.f32.mrf.mxu0
    %2932 = vdwg.mxu0
    %2933 = vmatprep.subr.bf16.mxu0 0
    %2934 = vmatpush1.bf16.msra.mxu0 %v2868
    %2935 = vmatprep.subr.bf16.mxu0 0
    %2936 = vmatpush1.bf16.msra.mxu0 %v2867
    %2937 = vmatprep.subr.bf16.mxu0 0
    %2938 = vmatpush1.bf16.msra.mxu0 %v2866
    %2939 = vmatprep.subr.bf16.mxu0 0
    %2940 = vmatpush1.bf16.msra.mxu0 %v2865
    %2941 = vmatprep.subr.bf16.mxu0 0
    %2942 = vmatpush1.bf16.msra.mxu0 %v2864
    %2943 = vmatprep.subr.bf16.mxu0 0
    %2944 = vmatpush1.bf16.msra.mxu0 %v2863
    %2945 = vmatprep.subr.bf16.mxu0 0
    %2946 = vmatpush1.bf16.msra.mxu0 %v2862
    %2947 = vmatprep.subr.bf16.mxu0 0
    %2948 = vmatpush1.bf16.msra.mxu0 %v2861
    %2949 = vmatprep.subr.bf16.mxu0 0
    %2950 = vmatpush2.bf16.msra.mxu0 0
    %2951 = vmatprep.subr.bf16.mxu0 0
    %2952 = vmatpush2.bf16.msra.mxu0 0
    %2953 = vmatprep.subr.bf16.mxu0 0
    %2954 = vmatpush2.bf16.msra.mxu0 0
    %2955 = vmatprep.subr.bf16.mxu0 0
    %2956 = vmatpush2.bf16.msra.mxu0 0
    %2957 = vmatprep.subr.bf16.mxu0 0
    %2958 = vmatpush2.bf16.msra.mxu0 0
    %2959 = vmatprep.subr.bf16.mxu0 0
    %2960 = vmatpush2.bf16.msra.mxu0 0
    %2961 = vmatprep.subr.bf16.mxu0 0
    %2962 = vmatpush2.bf16.msra.mxu0 0
    %2963 = vmatprep.subr.bf16.mxu0 0
    %2964 = vmatpush2.bf16.msra.mxu0 0
    %2965 = vmatprep.mubr.bf16.mxu0 0
    %2966 = vmatmul.mubr.bf16.gmra.mxu0 %v2693
    %v2967 = vpop.f32.mrf.mxu0
    %v2968 = vadd.f32 %v2928, %v2967
    %v2969 = vpop.f32.mrf.mxu0
    %v2970 = vpop.f32.mrf.mxu0
    %v2971 = vpop.f32.mrf.mxu0
    %2972 = vdwg.mxu0
    %v2973 = vxor.u32 %v2968, 2147483648
    %v2974 = vmul.f32 %v2973, 1.442695
    %v2975 = vpow.pop %v2974
    %v2976 = vadd.f32 %v2975, 1.0
    %v2977 = vrcp.pop %v2976
    %v2978 = vmul.f32 1.0, %v2977
    %2979 = vst [vmem:[#allocation2] sm:$0xff] %v2978
    // Predicated region
    $region34: #{gcn_forward.1} parent=1 // pred_check
      _
    $region35: #{gcn_forward.1} parent=1 // pred_check_branch
      %2981 = sbr.rel (0) target = $region37
    $region36: #{gcn_forward.1} parent=1 // pred_region
      %s2983 = ssub.s32 128, 128
      %2984 = vsyncadd [#allocation3], %s2983
      %s2986 = sshll.u32 [#allocation2], 4
      %s2987 = int_to_ptr.vmem [resolvable:$true] %s2986
      %2989 = dma.vmem_to_hbm [thread:$0]  %s2987, 128, %s8, [#allocation3]
    $region37: #{gcn_forward.1} parent=1 // pred_fallthru
      _
    // Predicated region
    $region38: #{gcn_forward.1} parent=1 // pred_check
      _
    $region39: #{gcn_forward.1} parent=1 // pred_check_branch
      %2991 = sbr.rel (0) target = $region41
    $region40: #{gcn_forward.1} parent=1 // pred_region
      %s2993 = ssub.s32 384, 384
      %2994 = vsyncadd [#allocation5], %s2993
      %s2996 = sshll.u32 [#allocation4], 4
      %s2997 = int_to_ptr.vmem [resolvable:$true] %s2996
      %2999 = dma.vmem_to_hbm [thread:$0]  %s2997, 384, %s9, [#allocation5]
    $region41: #{gcn_forward.1} parent=1 // pred_fallthru
      _
    // Predicated region
    $region42: #{gcn_forward.1} parent=1 // pred_check
      _
    $region43: #{gcn_forward.1} parent=1 // pred_check_branch
      %3001 = sbr.rel (0) target = $region45
    $region44: #{gcn_forward.1} parent=1 // pred_region
      %3002 = dma.done [#allocation3], 128
    $region45: #{gcn_forward.1} parent=1 // pred_fallthru
      _
    // Predicated region
    $region46: #{gcn_forward.1} parent=1 // pred_check
      _
    $region47: #{gcn_forward.1} parent=1 // pred_check_branch
      %3004 = sbr.rel (0) target = $region49
    $region48: #{gcn_forward.1} parent=1 // pred_region
      %3005 = dma.done [#allocation5], 384
    $region49: #{gcn_forward.1} parent=1 // pred_fallthru
      _
    %3006 = vsyncpa [#allocation3], 1
    %3007 = vsyncpa [#allocation5], 1

</llo_original>
